<compile_context>
chip_gen: v7x
topology: tpu7x:2x2x1
jax: 0.10.0
libtpu: 0.0.40
codegen_flags: <defaults>
</compile_context>

<pallas_src>
import math
from functools import partial

import jax
import jax.numpy as jnp
from jax.experimental import pallas as pl
from jax.experimental.pallas import tpu as pltpu

_EPS = 1e-9          # matches nn.LayerNorm(..., eps=1e-09) in the reference module
_MASK_SCALE = -1e9


def _vmem_limit_bytes():
    """~3/4 of this generation's physical VMEM (96 MiB v5e/v6e, 48 MiB v7x)."""
    try:
        cap = int(getattr(pltpu.get_tpu_info(), "vmem_capacity_bytes", 0))
        if cap > 0:
            return cap * 3 // 4
    except Exception:
        pass
    return 48 * 1024 * 1024


# ---------------------------------------------------------------------------
# Single fused kernel: QKV projection + masked MHA + output projection +
# residual + LN1 + MLP + residual + LN3, one grid step per batch element.
# Matmul operands are bf16 with f32 accumulation; softmax / LayerNorm math f32.
# ---------------------------------------------------------------------------
def _decoder_layer_kernel(eps, H, Dh, store_attw,
                          x_ref, wqkv_ref, bqkv_ref, mask_ref, wd_ref, bd_ref,
                          w1_ref, b1_ref, w2_ref, b2_ref,
                          g1_ref, be1_ref, g3_ref, be3_ref,
                          out_ref, *attw_refs):
    f32, bf16 = jnp.float32, jnp.bfloat16
    S, D = x_ref.shape
    HD = H * Dh

    x = x_ref[...]                                    # (S, D) f32 (residual / LN in f32)
    xb = x.astype(bf16)

    # Fused, lane-dense QKV projection: one (S, D) @ (D, 3*H*Dh) MXU pass.
    # 1/sqrt(Dh) is pre-folded into the q columns of wqkv / bqkv in the wrapper.
    qkv = (jnp.dot(xb, wqkv_ref[...], preferred_element_type=f32)
           + bqkv_ref[...]).astype(bf16)              # (S, 3*H*Dh) bf16, never hits HBM

    mask_bias = mask_ref[...]                         # (S, S) f32, precomputed mask * -1e9

    acc = jnp.zeros((S, D), f32)                      # dense(concat_heads(.)) accumulator
    attw_parts = []
    for h in range(H):                                # static unroll: no per-head grid steps
        qh = qkv[:, h * Dh:(h + 1) * Dh]                           # (S, Dh) bf16
        kh = qkv[:, HD + h * Dh:HD + (h + 1) * Dh]                 # (S, Dh) bf16
        vh = qkv[:, 2 * HD + h * Dh:2 * HD + (h + 1) * Dh]         # (S, Dh) bf16

        # scores = q . k^T without an explicit transpose (contract last dims).
        scores = jax.lax.dot_general(
            qh, kh, (((1,), (1,)), ((), ())),
            preferred_element_type=f32) + mask_bias                # (S, S) f32

        m = jnp.max(scores, axis=-1, keepdims=True)
        e = jnp.exp(scores - m)
        w = e * pl.reciprocal(jnp.sum(e, axis=-1, keepdims=True), approx=True)
        if store_attw:
            attw_parts.append(w)

        ctx = jnp.dot(w.astype(bf16), vh, preferred_element_type=f32)      # (S, Dh)
        # This head's slice of dense(concat_heads(.)) -- no concat, no head-reduction axis.
        acc = acc + jnp.dot(ctx.astype(bf16), wd_ref[h], preferred_element_type=f32)

    if store_attw:
        # Single lane-major store: (S, H*S) slab; wrapper reshapes to (B, H, S, S).
        attw_refs[0][...] = jnp.concatenate(attw_parts, axis=-1).astype(attw_refs[0].dtype)

    def layernorm(z, g, b):
        mu = jnp.mean(z, axis=-1, keepdims=True)
        var = jnp.mean(jnp.square(z - mu), axis=-1, keepdims=True)
        return (z - mu) * jax.lax.rsqrt(var + eps) * g + b

    # TODO(synk): dropout1/dropout3 are identity (eval-mode semantics; RNG dropout omitted).
    attn = acc + bd_ref[...]                                        # dense bias
    h1 = layernorm(attn + x, g1_ref[...], be1_ref[...])
    a = jnp.dot(h1.astype(bf16), w1_ref[...], preferred_element_type=f32) + b1_ref[...]
    a = jnp.maximum(a, 0.0)
    y = jnp.dot(a.astype(bf16), w2_ref[...], preferred_element_type=f32) + b2_ref[...]
    out_ref[...] = layernorm(y + h1, g3_ref[...], be3_ref[...]).astype(out_ref.dtype)


# ---------------------------------------------------------------------------
# Wrapper
# ---------------------------------------------------------------------------
def decoder_layer(x, look_ahead_mask, params, attw_dtype=jnp.bfloat16):
    """x: (B, S, D) f32; look_ahead_mask: (S, S) (or batch-invariant (B, S, S)),
    1.0 = masked (future position).
    Returns (out (B, S, D) f32, attw (B, H, S, S) attw_dtype), or (out, None)
    when attw_dtype is None (skips the attention-weights writeback)."""
    B, S, D = x.shape
    H = params["H"]
    Dh = D                       # per-head dim == model dim in this module
    HID = params["w1"].shape[1]
    HD = H * Dh
    BS = B * S
    scale = 1.0 / math.sqrt(Dh)
    f32, bf16 = jnp.float32, jnp.bfloat16
    store_attw = attw_dtype is not None

    assert S % 8 == 0 or B == 1, "per-batch row tile must be sublane-aligned"

    # ---- wrapper-side layout / dtype plumbing (done once, outside the kernel) ----
    x2d = x.reshape(BS, D).astype(f32)

    # Fused QKV weight / bias (q columns pre-scaled by 1/sqrt(Dh)).
    wqkv = jnp.concatenate(
        [params["wq"] * scale, params["wk"], params["wv"]], axis=1).astype(bf16)   # (D, 3*H*Dh)
    bqkv = jnp.concatenate(
        [params["bq"] * scale, params["bk"], params["bv"]], axis=1).astype(f32)    # (1, 3*H*Dh)
    wd_hm = params["wd"].reshape(H, Dh, D).astype(bf16)          # head-major dense weight
    bd = params["bd"].reshape(1, D).astype(f32)

    if look_ahead_mask is None:
        mask_bias = jnp.zeros((S, S), f32)
    else:
        # TODO(synk): assumes a batch-invariant look-ahead mask; per-batch padding
        # masks would need a (B, S, S) input with a batch-indexed BlockSpec.
        mask_bias = look_ahead_mask.reshape(-1, S, S)[0].astype(f32) * _MASK_SCALE

    kernel = partial(_decoder_layer_kernel, _EPS, H, Dh, store_attw)

    out_shape = [jax.ShapeDtypeStruct((BS, D), f32)]
    out_specs = [pl.BlockSpec((S, D), lambda b: (b, 0))]
    if store_attw:
        out_shape.append(jax.ShapeDtypeStruct((BS, H * S), attw_dtype))
        out_specs.append(pl.BlockSpec((S, H * S), lambda b: (b, 0)))

    # Rough flop / byte counts so XLA can schedule the wrapper-side casts/reshapes
    # around the kernel instead of serializing them.
    flops = B * (2 * S * D * 3 * HD                        # qkv
                 + H * (4 * S * S * Dh + 2 * S * Dh * D)   # attention + out-projection
                 + 2 * S * D * HID + 2 * S * HID * D)      # mlp
    transcendentals = B * (H * S * S + H * S + 2 * S)      # exp, approx recip, rsqrt
    bytes_accessed = (BS * D * 4                                            # x
                      + D * 3 * HD * 2 + 3 * HD * 4                         # wqkv / bqkv
                      + HD * D * 2 + D * HID * 2 + HID * D * 2              # wd / w1 / w2
                      + (6 * D + HID) * 4 + S * S * 4                       # biases / LN / mask
                      + BS * D * 4                                          # out
                      + (BS * H * S * jnp.dtype(attw_dtype).itemsize if store_attw else 0))

    # TODO(synk): at realistic S / D / HID this needs flash-style sequence tiling,
    # a K-tile axis (or pl.Buffered(1)) over the resident w1/w2/wd blocks, and a
    # row-tile parallel axis so v7x's two cores stay busy when B == 1.
    results = pl.pallas_call(
        kernel,
        out_shape=out_shape,
        grid_spec=pltpu.PrefetchScalarGridSpec(
            num_scalar_prefetch=0,
            grid=(B,),
            in_specs=[
                pl.BlockSpec((S, D), lambda b: (b, 0)),          # x (f32, residual + matmul input)
                pl.BlockSpec((D, 3 * HD), lambda b: (0, 0)),     # wqkv (bf16, fused, lane-dense)
                pl.BlockSpec((1, 3 * HD), lambda b: (0, 0)),     # bqkv
                pl.BlockSpec((S, S), lambda b: (0, 0)),          # mask bias (batch-invariant)
                pl.BlockSpec((H, Dh, D), lambda b: (0, 0, 0)),   # wd (head-major, bf16)
                pl.BlockSpec((1, D), lambda b: (0, 0)),          # bd
                pl.BlockSpec((D, HID), lambda b: (0, 0)),        # w1 (bf16)
                pl.BlockSpec((1, HID), lambda b: (0, 0)),        # b1
                pl.BlockSpec((HID, D), lambda b: (0, 0)),        # w2 (bf16)
                pl.BlockSpec((1, D), lambda b: (0, 0)),          # b2
                pl.BlockSpec((1, D), lambda b: (0, 0)),          # g1
                pl.BlockSpec((1, D), lambda b: (0, 0)),          # be1
                pl.BlockSpec((1, D), lambda b: (0, 0)),          # g3
                pl.BlockSpec((1, D), lambda b: (0, 0)),          # be3
            ],
            out_specs=out_specs,
        ),
        compiler_params=pltpu.CompilerParams(
            dimension_semantics=("parallel",),
            vmem_limit_bytes=_vmem_limit_bytes()),
        cost_estimate=pl.CostEstimate(
            flops=int(flops),
            transcendentals=int(transcendentals),
            bytes_accessed=int(bytes_accessed)),
    )(x2d, wqkv, bqkv, mask_bias, wd_hm, bd,
      params["w1"].astype(bf16), params["b1"].reshape(1, HID).astype(f32),
      params["w2"].astype(bf16), params["b2"].reshape(1, D).astype(f32),
      params["g1"].reshape(1, D).astype(f32), params["be1"].reshape(1, D).astype(f32),
      params["g3"].reshape(1, D).astype(f32), params["be3"].reshape(1, D).astype(f32))

    if store_attw:
        out2d, attw2d = results
        attw = attw2d.reshape(B, S, H, S).transpose(0, 2, 1, 3)   # -> (B, H, S, S)
    else:
        out2d = results[0] if isinstance(results, (list, tuple)) else results
        attw = None
    return out2d.reshape(B, S, D), attw


def init_params(key, D, H, HID):
    DH = D * H
    ks = jax.random.split(key, 6)
    f32 = jnp.float32
    return {
        "H": H,
        "wq": jax.random.normal(ks[0], (D, DH), f32) * 0.02, "bq": jnp.zeros((1, DH), f32),
        "wk": jax.random.normal(ks[1], (D, DH), f32) * 0.02, "bk": jnp.zeros((1, DH), f32),
        "wv": jax.random.normal(ks[2], (D, DH), f32) * 0.02, "bv": jnp.zeros((1, DH), f32),
        "wd": jax.random.normal(ks[3], (DH, D), f32) * 0.02, "bd": jnp.zeros((1, D), f32),
        "w1": jax.random.normal(ks[4], (D, HID), f32) * 0.02, "b1": jnp.zeros((1, HID), f32),
        "w2": jax.random.normal(ks[5], (HID, D), f32) * 0.02, "b2": jnp.zeros((1, D), f32),
        "g1": jnp.ones((1, D), f32), "be1": jnp.zeros((1, D), f32),
        "g3": jnp.ones((1, D), f32), "be3": jnp.zeros((1, D), f32),
    }


def _reference(x, mask2d, params):
    """Pure-JAX f32 reference of the PyTorch DecoderLayer forward (eval mode)."""
    B, S, D = x.shape
    H = params["H"]
    q = x @ params["wq"] + params["bq"]
    k = x @ params["wk"] + params["bk"]
    v = x @ params["wv"] + params["bv"]
    split = lambda t: t.reshape(B, S, H, D).transpose(0, 2, 1, 3)
    q, k, v = split(q), split(k), split(v)
    s = jnp.einsum("bhqd,bhkd->bhqk", q, k) / math.sqrt(D)
    s = s + mask2d * _MASK_SCALE
    w = jax.nn.softmax(s, axis=-1)
    ctx = jnp.einsum("bhqk,bhkd->bhqd", w, v)
    ctx = ctx.transpose(0, 2, 1, 3).reshape(B, S, H * D)
    attn = ctx @ params["wd"] + params["bd"]

    def ln(z, g, b):
        mu = z.mean(-1, keepdims=True)
        var = ((z - mu) ** 2).mean(-1, keepdims=True)
        return (z - mu) / jnp.sqrt(var + _EPS) * g + b

    h1 = ln(attn + x, params["g1"], params["be1"])
    m = jnp.maximum(h1 @ params["w1"] + params["b1"], 0.0)
    m = m @ params["w2"] + params["b2"]
    return ln(m + h1, params["g3"], params["be3"]), w


if __name__ == "__main__":
    B, S, D, H, HID = 2, 8, 32, 4, 64

    key = jax.random.PRNGKey(0)
    kx, kp = jax.random.split(key)

    x = jax.random.normal(kx, (B, S, D), jnp.float32)
    # Standard look-ahead mask: 1 where attention is disallowed (future positions).
    look_ahead_mask = jnp.triu(jnp.ones((S, S), jnp.float32), k=1)
    params = init_params(kp, D, H, HID)

    out, attn_w = decoder_layer(x, look_ahead_mask, params)
    jax.block_until_ready(out)
    jax.block_until_ready(attn_w)

    assert out.shape == (B, S, D)
    assert attn_w.shape == (B, H, S, S)
    assert bool(jnp.all(jnp.isfinite(out)))

    # Loose tolerance: kernel uses bf16 matmul operands, bf16 attention-weight
    # storage, and an approx reciprocal in the softmax.
    ref_out, ref_w = _reference(x, look_ahead_mask, params)
    assert bool(jnp.allclose(out, ref_out, atol=1e-1, rtol=1e-1)), "output mismatch vs reference"
    assert bool(jnp.allclose(attn_w.astype(jnp.float32), ref_w, atol=5e-2, rtol=5e-2)), \
        "attention-weights mismatch vs reference"

    print("KERNEL_OK")
</pallas_src>

<mosaic_0001>
module attributes {stable_mosaic.version = 11 : i64} {
  func.func @_decoder_layer_kernel(%arg0: i32, %arg1: memref<8x32xf32, #tpu.memory_space<vmem>>, %arg2: memref<32x384xbf16, #tpu.memory_space<vmem>>, %arg3: memref<1x384xf32, #tpu.memory_space<vmem>>, %arg4: memref<8x8xf32, #tpu.memory_space<vmem>>, %arg5: memref<4x32x32xbf16, #tpu.memory_space<vmem>>, %arg6: memref<1x32xf32, #tpu.memory_space<vmem>>, %arg7: memref<32x64xbf16, #tpu.memory_space<vmem>>, %arg8: memref<1x64xf32, #tpu.memory_space<vmem>>, %arg9: memref<64x32xbf16, #tpu.memory_space<vmem>>, %arg10: memref<1x32xf32, #tpu.memory_space<vmem>>, %arg11: memref<1x32xf32, #tpu.memory_space<vmem>>, %arg12: memref<1x32xf32, #tpu.memory_space<vmem>>, %arg13: memref<1x32xf32, #tpu.memory_space<vmem>>, %arg14: memref<1x32xf32, #tpu.memory_space<vmem>>, %arg15: memref<8x32xf32, #tpu.memory_space<vmem>>, %arg16: memref<8x32xbf16, #tpu.memory_space<vmem>>) attributes {dimension_semantics = [#tpu.dimension_semantics<parallel>], iteration_bounds = array<i64: 2>, scalar_prefetch = 0 : i64, scratch_operands = 0 : i64, tpu.core_type = #tpu.core_type<tc>, window_params = [{transform_indices = @transform_0, window_bounds = array<i64: 8, 32>}, {pipeline_mode = #tpu.pipeline_mode<synchronous>, transform_indices = @transform_1, window_bounds = array<i64: 32, 384>}, {pipeline_mode = #tpu.pipeline_mode<synchronous>, transform_indices = @transform_2, window_bounds = array<i64: 1, 384>}, {pipeline_mode = #tpu.pipeline_mode<synchronous>, transform_indices = @transform_3, window_bounds = array<i64: 8, 8>}, {pipeline_mode = #tpu.pipeline_mode<synchronous>, transform_indices = @transform_4, window_bounds = array<i64: 4, 32, 32>}, {pipeline_mode = #tpu.pipeline_mode<synchronous>, transform_indices = @transform_5, window_bounds = array<i64: 1, 32>}, {pipeline_mode = #tpu.pipeline_mode<synchronous>, transform_indices = @transform_6, window_bounds = array<i64: 32, 64>}, {pipeline_mode = #tpu.pipeline_mode<synchronous>, transform_indices = @transform_7, window_bounds = array<i64: 1, 64>}, {pipeline_mode = #tpu.pipeline_mode<synchronous>, transform_indices = @transform_8, window_bounds = array<i64: 64, 32>}, {pipeline_mode = #tpu.pipeline_mode<synchronous>, transform_indices = @transform_9, window_bounds = array<i64: 1, 32>}, {pipeline_mode = #tpu.pipeline_mode<synchronous>, transform_indices = @transform_10, window_bounds = array<i64: 1, 32>}, {pipeline_mode = #tpu.pipeline_mode<synchronous>, transform_indices = @transform_11, window_bounds = array<i64: 1, 32>}, {pipeline_mode = #tpu.pipeline_mode<synchronous>, transform_indices = @transform_12, window_bounds = array<i64: 1, 32>}, {pipeline_mode = #tpu.pipeline_mode<synchronous>, transform_indices = @transform_13, window_bounds = array<i64: 1, 32>}, {transform_indices = @transform_14, window_bounds = array<i64: 8, 32>}, {transform_indices = @transform_15, window_bounds = array<i64: 8, 32>}]} {
    %c0 = arith.constant 0 : index
    %c0_0 = arith.constant 0 : index
    %0 = vector.load %arg1[%c0, %c0_0] : memref<8x32xf32, #tpu.memory_space<vmem>>, vector<8x32xf32>
    %1 = arith.truncf %0 : vector<8x32xf32> to vector<8x32xbf16>
    %c0_1 = arith.constant 0 : index
    %c0_2 = arith.constant 0 : index
    %2 = vector.load %arg2[%c0_1, %c0_2] : memref<32x384xbf16, #tpu.memory_space<vmem>>, vector<32x384xbf16>
    %cst = arith.constant dense<0.000000e+00> : vector<8x384xf32>
    %3 = tpu.matmul %1, %2, %cst {dimension_numbers = #tpu.dot_dimension_numbers<[1], [0], [0], [1], [0, 0, 1, 1], [], []>} : vector<8x32xbf16>, vector<32x384xbf16>, vector<8x384xf32> -> vector<8x384xf32>
    %c0_3 = arith.constant 0 : index
    %c0_4 = arith.constant 0 : index
    %4 = vector.load %arg3[%c0_3, %c0_4] : memref<1x384xf32, #tpu.memory_space<vmem>>, vector<1x384xf32>
    %5 = vector.broadcast %4 : vector<1x384xf32> to vector<8x384xf32>
    %6 = arith.addf %3, %5 : vector<8x384xf32>
    %7 = arith.truncf %6 : vector<8x384xf32> to vector<8x384xbf16>
    %c0_5 = arith.constant 0 : index
    %c0_6 = arith.constant 0 : index
    %8 = vector.load %arg4[%c0_5, %c0_6] : memref<8x8xf32, #tpu.memory_space<vmem>>, vector<8x8xf32>
    %cst_7 = arith.constant 0.000000e+00 : f32
    %9 = vector.broadcast %cst_7 : f32 to vector<8x32xf32>
    %10 = vector.extract_strided_slice %7 {offsets = [0, 0], sizes = [8, 32], strides = [1, 1]} : vector<8x384xbf16> to vector<8x32xbf16>
    %11 = vector.extract_strided_slice %7 {offsets = [0, 128], sizes = [8, 32], strides = [1, 1]} : vector<8x384xbf16> to vector<8x32xbf16>
    %12 = vector.extract_strided_slice %7 {offsets = [0, 256], sizes = [8, 32], strides = [1, 1]} : vector<8x384xbf16> to vector<8x32xbf16>
    %cst_8 = arith.constant dense<0.000000e+00> : vector<8x8xf32>
    %13 = tpu.matmul %10, %11, %cst_8 {dimension_numbers = #tpu.dot_dimension_numbers<[1], [1], [0], [0], [0, 0, 1, 0], [], []>} : vector<8x32xbf16>, vector<8x32xbf16>, vector<8x8xf32> -> vector<8x8xf32>
    %14 = arith.addf %13, %8 : vector<8x8xf32>
    %cst_9 = arith.constant dense<0xFF800000> : vector<8xf32>
    %15 = vector.multi_reduction <maximumf>, %14, %cst_9 [1] : vector<8x8xf32> to vector<8xf32>
    %16 = vector.shape_cast %15 : vector<8xf32> to vector<8x1xf32>
    %17 = vector.broadcast %16 : vector<8x1xf32> to vector<8x8xf32>
    %18 = arith.subf %14, %17 : vector<8x8xf32>
    %19 = math.exp %18 : vector<8x8xf32>
    %cst_10 = arith.constant dense<0.000000e+00> : vector<8xf32>
    %20 = vector.multi_reduction <add>, %19, %cst_10 [1] : vector<8x8xf32> to vector<8xf32>
    %21 = vector.shape_cast %20 : vector<8xf32> to vector<8x1xf32>
    %22 = tpu.reciprocal %21 {approx = true} : vector<8x1xf32> -> vector<8x1xf32>
    %23 = vector.broadcast %22 : vector<8x1xf32> to vector<8x8xf32>
    %24 = arith.mulf %19, %23 : vector<8x8xf32>
    %25 = arith.truncf %24 : vector<8x8xf32> to vector<8x8xbf16>
    %cst_11 = arith.constant dense<0.000000e+00> : vector<8x32xf32>
    %26 = tpu.matmul %25, %12, %cst_11 {dimension_numbers = #tpu.dot_dimension_numbers<[1], [0], [0], [1], [0, 0, 1, 1], [], []>} : vector<8x8xbf16>, vector<8x32xbf16>, vector<8x32xf32> -> vector<8x32xf32>
    %27 = arith.truncf %26 : vector<8x32xf32> to vector<8x32xbf16>
    %c0_12 = arith.constant 0 : index
    %c0_13 = arith.constant 0 : index
    %c0_14 = arith.constant 0 : index
    %28 = vector.load %arg5[%c0_12, %c0_13, %c0_14] : memref<4x32x32xbf16, #tpu.memory_space<vmem>>, vector<1x32x32xbf16>
    %29 = vector.shape_cast %28 : vector<1x32x32xbf16> to vector<32x32xbf16>
    %cst_15 = arith.constant dense<0.000000e+00> : vector<8x32xf32>
    %30 = tpu.matmul %27, %29, %cst_15 {dimension_numbers = #tpu.dot_dimension_numbers<[1], [0], [0], [1], [0, 0, 1, 1], [], []>} : vector<8x32xbf16>, vector<32x32xbf16>, vector<8x32xf32> -> vector<8x32xf32>
    %31 = arith.addf %9, %30 : vector<8x32xf32>
    %32 = vector.extract_strided_slice %7 {offsets = [0, 32], sizes = [8, 32], strides = [1, 1]} : vector<8x384xbf16> to vector<8x32xbf16>
    %33 = vector.extract_strided_slice %7 {offsets = [0, 160], sizes = [8, 32], strides = [1, 1]} : vector<8x384xbf16> to vector<8x32xbf16>
    %34 = vector.extract_strided_slice %7 {offsets = [0, 288], sizes = [8, 32], strides = [1, 1]} : vector<8x384xbf16> to vector<8x32xbf16>
    %cst_16 = arith.constant dense<0.000000e+00> : vector<8x8xf32>
    %35 = tpu.matmul %32, %33, %cst_16 {dimension_numbers = #tpu.dot_dimension_numbers<[1], [1], [0], [0], [0, 0, 1, 0], [], []>} : vector<8x32xbf16>, vector<8x32xbf16>, vector<8x8xf32> -> vector<8x8xf32>
    %36 = arith.addf %35, %8 : vector<8x8xf32>
    %cst_17 = arith.constant dense<0xFF800000> : vector<8xf32>
    %37 = vector.multi_reduction <maximumf>, %36, %cst_17 [1] : vector<8x8xf32> to vector<8xf32>
    %38 = vector.shape_cast %37 : vector<8xf32> to vector<8x1xf32>
    %39 = vector.broadcast %38 : vector<8x1xf32> to vector<8x8xf32>
    %40 = arith.subf %36, %39 : vector<8x8xf32>
    %41 = math.exp %40 : vector<8x8xf32>
    %cst_18 = arith.constant dense<0.000000e+00> : vector<8xf32>
    %42 = vector.multi_reduction <add>, %41, %cst_18 [1] : vector<8x8xf32> to vector<8xf32>
    %43 = vector.shape_cast %42 : vector<8xf32> to vector<8x1xf32>
    %44 = tpu.reciprocal %43 {approx = true} : vector<8x1xf32> -> vector<8x1xf32>
    %45 = vector.broadcast %44 : vector<8x1xf32> to vector<8x8xf32>
    %46 = arith.mulf %41, %45 : vector<8x8xf32>
    %47 = arith.truncf %46 : vector<8x8xf32> to vector<8x8xbf16>
    %cst_19 = arith.constant dense<0.000000e+00> : vector<8x32xf32>
    %48 = tpu.matmul %47, %34, %cst_19 {dimension_numbers = #tpu.dot_dimension_numbers<[1], [0], [0], [1], [0, 0, 1, 1], [], []>} : vector<8x8xbf16>, vector<8x32xbf16>, vector<8x32xf32> -> vector<8x32xf32>
    %49 = arith.truncf %48 : vector<8x32xf32> to vector<8x32xbf16>
    %c1 = arith.constant 1 : index
    %c0_20 = arith.constant 0 : index
    %c0_21 = arith.constant 0 : index
    %50 = vector.load %arg5[%c1, %c0_20, %c0_21] : memref<4x32x32xbf16, #tpu.memory_space<vmem>>, vector<1x32x32xbf16>
    %51 = vector.shape_cast %50 : vector<1x32x32xbf16> to vector<32x32xbf16>
    %cst_22 = arith.constant dense<0.000000e+00> : vector<8x32xf32>
    %52 = tpu.matmul %49, %51, %cst_22 {dimension_numbers = #tpu.dot_dimension_numbers<[1], [0], [0], [1], [0, 0, 1, 1], [], []>} : vector<8x32xbf16>, vector<32x32xbf16>, vector<8x32xf32> -> vector<8x32xf32>
    %53 = arith.addf %31, %52 : vector<8x32xf32>
    %54 = vector.extract_strided_slice %7 {offsets = [0, 64], sizes = [8, 32], strides = [1, 1]} : vector<8x384xbf16> to vector<8x32xbf16>
    %55 = vector.extract_strided_slice %7 {offsets = [0, 192], sizes = [8, 32], strides = [1, 1]} : vector<8x384xbf16> to vector<8x32xbf16>
    %56 = vector.extract_strided_slice %7 {offsets = [0, 320], sizes = [8, 32], strides = [1, 1]} : vector<8x384xbf16> to vector<8x32xbf16>
    %cst_23 = arith.constant dense<0.000000e+00> : vector<8x8xf32>
    %57 = tpu.matmul %54, %55, %cst_23 {dimension_numbers = #tpu.dot_dimension_numbers<[1], [1], [0], [0], [0, 0, 1, 0], [], []>} : vector<8x32xbf16>, vector<8x32xbf16>, vector<8x8xf32> -> vector<8x8xf32>
    %58 = arith.addf %57, %8 : vector<8x8xf32>
    %cst_24 = arith.constant dense<0xFF800000> : vector<8xf32>
    %59 = vector.multi_reduction <maximumf>, %58, %cst_24 [1] : vector<8x8xf32> to vector<8xf32>
    %60 = vector.shape_cast %59 : vector<8xf32> to vector<8x1xf32>
    %61 = vector.broadcast %60 : vector<8x1xf32> to vector<8x8xf32>
    %62 = arith.subf %58, %61 : vector<8x8xf32>
    %63 = math.exp %62 : vector<8x8xf32>
    %cst_25 = arith.constant dense<0.000000e+00> : vector<8xf32>
    %64 = vector.multi_reduction <add>, %63, %cst_25 [1] : vector<8x8xf32> to vector<8xf32>
    %65 = vector.shape_cast %64 : vector<8xf32> to vector<8x1xf32>
    %66 = tpu.reciprocal %65 {approx = true} : vector<8x1xf32> -> vector<8x1xf32>
    %67 = vector.broadcast %66 : vector<8x1xf32> to vector<8x8xf32>
    %68 = arith.mulf %63, %67 : vector<8x8xf32>
    %69 = arith.truncf %68 : vector<8x8xf32> to vector<8x8xbf16>
    %cst_26 = arith.constant dense<0.000000e+00> : vector<8x32xf32>
    %70 = tpu.matmul %69, %56, %cst_26 {dimension_numbers = #tpu.dot_dimension_numbers<[1], [0], [0], [1], [0, 0, 1, 1], [], []>} : vector<8x8xbf16>, vector<8x32xbf16>, vector<8x32xf32> -> vector<8x32xf32>
    %71 = arith.truncf %70 : vector<8x32xf32> to vector<8x32xbf16>
    %c2 = arith.constant 2 : index
    %c0_27 = arith.constant 0 : index
    %c0_28 = arith.constant 0 : index
    %72 = vector.load %arg5[%c2, %c0_27, %c0_28] : memref<4x32x32xbf16, #tpu.memory_space<vmem>>, vector<1x32x32xbf16>
    %73 = vector.shape_cast %72 : vector<1x32x32xbf16> to vector<32x32xbf16>
    %cst_29 = arith.constant dense<0.000000e+00> : vector<8x32xf32>
    %74 = tpu.matmul %71, %73, %cst_29 {dimension_numbers = #tpu.dot_dimension_numbers<[1], [0], [0], [1], [0, 0, 1, 1], [], []>} : vector<8x32xbf16>, vector<32x32xbf16>, vector<8x32xf32> -> vector<8x32xf32>
    %75 = arith.addf %53, %74 : vector<8x32xf32>
    %76 = vector.extract_strided_slice %7 {offsets = [0, 96], sizes = [8, 32], strides = [1, 1]} : vector<8x384xbf16> to vector<8x32xbf16>
    %77 = vector.extract_strided_slice %7 {offsets = [0, 224], sizes = [8, 32], strides = [1, 1]} : vector<8x384xbf16> to vector<8x32xbf16>
    %78 = vector.extract_strided_slice %7 {offsets = [0, 352], sizes = [8, 32], strides = [1, 1]} : vector<8x384xbf16> to vector<8x32xbf16>
    %cst_30 = arith.constant dense<0.000000e+00> : vector<8x8xf32>
    %79 = tpu.matmul %76, %77, %cst_30 {dimension_numbers = #tpu.dot_dimension_numbers<[1], [1], [0], [0], [0, 0, 1, 0], [], []>} : vector<8x32xbf16>, vector<8x32xbf16>, vector<8x8xf32> -> vector<8x8xf32>
    %80 = arith.addf %79, %8 : vector<8x8xf32>
    %cst_31 = arith.constant dense<0xFF800000> : vector<8xf32>
    %81 = vector.multi_reduction <maximumf>, %80, %cst_31 [1] : vector<8x8xf32> to vector<8xf32>
    %82 = vector.shape_cast %81 : vector<8xf32> to vector<8x1xf32>
    %83 = vector.broadcast %82 : vector<8x1xf32> to vector<8x8xf32>
    %84 = arith.subf %80, %83 : vector<8x8xf32>
    %85 = math.exp %84 : vector<8x8xf32>
    %cst_32 = arith.constant dense<0.000000e+00> : vector<8xf32>
    %86 = vector.multi_reduction <add>, %85, %cst_32 [1] : vector<8x8xf32> to vector<8xf32>
    %87 = vector.shape_cast %86 : vector<8xf32> to vector<8x1xf32>
    %88 = tpu.reciprocal %87 {approx = true} : vector<8x1xf32> -> vector<8x1xf32>
    %89 = vector.broadcast %88 : vector<8x1xf32> to vector<8x8xf32>
    %90 = arith.mulf %85, %89 : vector<8x8xf32>
    %91 = arith.truncf %90 : vector<8x8xf32> to vector<8x8xbf16>
    %cst_33 = arith.constant dense<0.000000e+00> : vector<8x32xf32>
    %92 = tpu.matmul %91, %78, %cst_33 {dimension_numbers = #tpu.dot_dimension_numbers<[1], [0], [0], [1], [0, 0, 1, 1], [], []>} : vector<8x8xbf16>, vector<8x32xbf16>, vector<8x32xf32> -> vector<8x32xf32>
    %93 = arith.truncf %92 : vector<8x32xf32> to vector<8x32xbf16>
    %c3 = arith.constant 3 : index
    %c0_34 = arith.constant 0 : index
    %c0_35 = arith.constant 0 : index
    %94 = vector.load %arg5[%c3, %c0_34, %c0_35] : memref<4x32x32xbf16, #tpu.memory_space<vmem>>, vector<1x32x32xbf16>
    %95 = vector.shape_cast %94 : vector<1x32x32xbf16> to vector<32x32xbf16>
    %cst_36 = arith.constant dense<0.000000e+00> : vector<8x32xf32>
    %96 = tpu.matmul %93, %95, %cst_36 {dimension_numbers = #tpu.dot_dimension_numbers<[1], [0], [0], [1], [0, 0, 1, 1], [], []>} : vector<8x32xbf16>, vector<32x32xbf16>, vector<8x32xf32> -> vector<8x32xf32>
    %97 = arith.addf %75, %96 : vector<8x32xf32>
    %98 = tpu.concatenate %24, %46, %68, %90 in 1 : vector<8x8xf32>, vector<8x8xf32>, vector<8x8xf32>, vector<8x8xf32> -> vector<8x32xf32>
    %99 = arith.truncf %98 : vector<8x32xf32> to vector<8x32xbf16>
    %c0_37 = arith.constant 0 : index
    %c0_38 = arith.constant 0 : index
    %100 = vector.load %arg16[%c0_37, %c0_38] : memref<8x32xbf16, #tpu.memory_space<vmem>>, vector<8x32xbf16>
    tpu.vector_store %arg16[%c0_37, %c0_38], %99 {strides = array<i32>} : memref<8x32xbf16, #tpu.memory_space<vmem>>, vector<8x32xbf16>,
    %c0_39 = arith.constant 0 : index
    %c0_40 = arith.constant 0 : index
    %101 = vector.load %arg6[%c0_39, %c0_40] : memref<1x32xf32, #tpu.memory_space<vmem>>, vector<1x32xf32>
    %102 = vector.broadcast %101 : vector<1x32xf32> to vector<8x32xf32>
    %103 = arith.addf %97, %102 : vector<8x32xf32>
    %104 = arith.addf %103, %0 : vector<8x32xf32>
    %c0_41 = arith.constant 0 : index
    %c0_42 = arith.constant 0 : index
    %105 = vector.load %arg11[%c0_41, %c0_42] : memref<1x32xf32, #tpu.memory_space<vmem>>, vector<1x32xf32>
    %c0_43 = arith.constant 0 : index
    %c0_44 = arith.constant 0 : index
    %106 = vector.load %arg12[%c0_43, %c0_44] : memref<1x32xf32, #tpu.memory_space<vmem>>, vector<1x32xf32>
    %cst_45 = arith.constant dense<0.000000e+00> : vector<8xf32>
    %107 = vector.multi_reduction <add>, %104, %cst_45 [1] : vector<8x32xf32> to vector<8xf32>
    %108 = vector.shape_cast %107 : vector<8xf32> to vector<8x1xf32>
    %cst_46 = arith.constant 3.200000e+01 : f32
    %109 = vector.broadcast %cst_46 : f32 to vector<8x1xf32>
    %110 = arith.divf %108, %109 : vector<8x1xf32>
    %111 = vector.broadcast %110 : vector<8x1xf32> to vector<8x32xf32>
    %112 = arith.subf %104, %111 : vector<8x32xf32>
    %113 = arith.mulf %112, %112 : vector<8x32xf32>
    %cst_47 = arith.constant dense<0.000000e+00> : vector<8xf32>
    %114 = vector.multi_reduction <add>, %113, %cst_47 [1] : vector<8x32xf32> to vector<8xf32>
    %115 = vector.shape_cast %114 : vector<8xf32> to vector<8x1xf32>
    %cst_48 = arith.constant 3.200000e+01 : f32
    %116 = vector.broadcast %cst_48 : f32 to vector<8x1xf32>
    %117 = arith.divf %115, %116 : vector<8x1xf32>
    %118 = vector.broadcast %110 : vector<8x1xf32> to vector<8x32xf32>
    %119 = arith.subf %104, %118 : vector<8x32xf32>
    %cst_49 = arith.constant 9.99999971E-10 : f32
    %120 = vector.broadcast %cst_49 : f32 to vector<8x1xf32>
    %121 = arith.addf %117, %120 : vector<8x1xf32>
    %122 = math.rsqrt %121 : vector<8x1xf32>
    %123 = vector.broadcast %122 : vector<8x1xf32> to vector<8x32xf32>
    %124 = arith.mulf %119, %123 : vector<8x32xf32>
    %125 = vector.broadcast %105 : vector<1x32xf32> to vector<8x32xf32>
    %126 = arith.mulf %124, %125 : vector<8x32xf32>
    %127 = vector.broadcast %106 : vector<1x32xf32> to vector<8x32xf32>
    %128 = arith.addf %126, %127 : vector<8x32xf32>
    %129 = arith.truncf %128 : vector<8x32xf32> to vector<8x32xbf16>
    %c0_50 = arith.constant 0 : index
    %c0_51 = arith.constant 0 : index
    %130 = vector.load %arg7[%c0_50, %c0_51] : memref<32x64xbf16, #tpu.memory_space<vmem>>, vector<32x64xbf16>
    %cst_52 = arith.constant dense<0.000000e+00> : vector<8x64xf32>
    %131 = tpu.matmul %129, %130, %cst_52 {dimension_numbers = #tpu.dot_dimension_numbers<[1], [0], [0], [1], [0, 0, 1, 1], [], []>} : vector<8x32xbf16>, vector<32x64xbf16>, vector<8x64xf32> -> vector<8x64xf32>
    %c0_53 = arith.constant 0 : index
    %c0_54 = arith.constant 0 : index
    %132 = vector.load %arg8[%c0_53, %c0_54] : memref<1x64xf32, #tpu.memory_space<vmem>>, vector<1x64xf32>
    %133 = vector.broadcast %132 : vector<1x64xf32> to vector<8x64xf32>
    %134 = arith.addf %131, %133 : vector<8x64xf32>
    %cst_55 = arith.constant 0.000000e+00 : f32
    %135 = vector.broadcast %cst_55 : f32 to vector<8x64xf32>
    %136 = arith.maximumf %134, %135 : vector<8x64xf32>
    %137 = arith.truncf %136 : vector<8x64xf32> to vector<8x64xbf16>
    %c0_56 = arith.constant 0 : index
    %c0_57 = arith.constant 0 : index
    %138 = vector.load %arg9[%c0_56, %c0_57] : memref<64x32xbf16, #tpu.memory_space<vmem>>, vector<64x32xbf16>
    %cst_58 = arith.constant dense<0.000000e+00> : vector<8x32xf32>
    %139 = tpu.matmul %137, %138, %cst_58 {dimension_numbers = #tpu.dot_dimension_numbers<[1], [0], [0], [1], [0, 0, 1, 1], [], []>} : vector<8x64xbf16>, vector<64x32xbf16>, vector<8x32xf32> -> vector<8x32xf32>
    %c0_59 = arith.constant 0 : index
    %c0_60 = arith.constant 0 : index
    %140 = vector.load %arg10[%c0_59, %c0_60] : memref<1x32xf32, #tpu.memory_space<vmem>>, vector<1x32xf32>
    %141 = vector.broadcast %140 : vector<1x32xf32> to vector<8x32xf32>
    %142 = arith.addf %139, %141 : vector<8x32xf32>
    %143 = arith.addf %142, %128 : vector<8x32xf32>
    %c0_61 = arith.constant 0 : index
    %c0_62 = arith.constant 0 : index
    %144 = vector.load %arg13[%c0_61, %c0_62] : memref<1x32xf32, #tpu.memory_space<vmem>>, vector<1x32xf32>
    %c0_63 = arith.constant 0 : index
    %c0_64 = arith.constant 0 : index
    %145 = vector.load %arg14[%c0_63, %c0_64] : memref<1x32xf32, #tpu.memory_space<vmem>>, vector<1x32xf32>
    %cst_65 = arith.constant dense<0.000000e+00> : vector<8xf32>
    %146 = vector.multi_reduction <add>, %143, %cst_65 [1] : vector<8x32xf32> to vector<8xf32>
    %147 = vector.shape_cast %146 : vector<8xf32> to vector<8x1xf32>
    %cst_66 = arith.constant 3.200000e+01 : f32
    %148 = vector.broadcast %cst_66 : f32 to vector<8x1xf32>
    %149 = arith.divf %147, %148 : vector<8x1xf32>
    %150 = vector.broadcast %149 : vector<8x1xf32> to vector<8x32xf32>
    %151 = arith.subf %143, %150 : vector<8x32xf32>
    %152 = arith.mulf %151, %151 : vector<8x32xf32>
    %cst_67 = arith.constant dense<0.000000e+00> : vector<8xf32>
    %153 = vector.multi_reduction <add>, %152, %cst_67 [1] : vector<8x32xf32> to vector<8xf32>
    %154 = vector.shape_cast %153 : vector<8xf32> to vector<8x1xf32>
    %cst_68 = arith.constant 3.200000e+01 : f32
    %155 = vector.broadcast %cst_68 : f32 to vector<8x1xf32>
    %156 = arith.divf %154, %155 : vector<8x1xf32>
    %157 = vector.broadcast %149 : vector<8x1xf32> to vector<8x32xf32>
    %158 = arith.subf %143, %157 : vector<8x32xf32>
    %cst_69 = arith.constant 9.99999971E-10 : f32
    %159 = vector.broadcast %cst_69 : f32 to vector<8x1xf32>
    %160 = arith.addf %156, %159 : vector<8x1xf32>
    %161 = math.rsqrt %160 : vector<8x1xf32>
    %162 = vector.broadcast %161 : vector<8x1xf32> to vector<8x32xf32>
    %163 = arith.mulf %158, %162 : vector<8x32xf32>
    %164 = vector.broadcast %144 : vector<1x32xf32> to vector<8x32xf32>
    %165 = arith.mulf %163, %164 : vector<8x32xf32>
    %166 = vector.broadcast %145 : vector<1x32xf32> to vector<8x32xf32>
    %167 = arith.addf %165, %166 : vector<8x32xf32>
    %c0_70 = arith.constant 0 : index
    %c0_71 = arith.constant 0 : index
    %168 = vector.load %arg15[%c0_70, %c0_71] : memref<8x32xf32, #tpu.memory_space<vmem>>, vector<8x32xf32>
    tpu.vector_store %arg15[%c0_70, %c0_71], %167 {strides = array<i32>} : memref<8x32xf32, #tpu.memory_space<vmem>>, vector<8x32xf32>,
    return
  }
  func.func @transform_0(%arg0: i32) -> (i32, i32) {
    %c0_i32 = arith.constant 0 : i32
    %c0_i32_0 = arith.constant 0 : i32
    return %arg0, %c0_i32 : i32, i32
  }
  func.func @transform_1(%arg0: i32) -> (i32, i32) {
    %c0_i32 = arith.constant 0 : i32
    %c0_i32_0 = arith.constant 0 : i32
    %c0_i32_1 = arith.constant 0 : i32
    return %c0_i32, %c0_i32_0 : i32, i32
  }
  func.func @transform_2(%arg0: i32) -> (i32, i32) {
    %c0_i32 = arith.constant 0 : i32
    %c0_i32_0 = arith.constant 0 : i32
    %c0_i32_1 = arith.constant 0 : i32
    return %c0_i32, %c0_i32_0 : i32, i32
  }
  func.func @transform_3(%arg0: i32) -> (i32, i32) {
    %c0_i32 = arith.constant 0 : i32
    %c0_i32_0 = arith.constant 0 : i32
    %c0_i32_1 = arith.constant 0 : i32
    return %c0_i32, %c0_i32_0 : i32, i32
  }
  func.func @transform_4(%arg0: i32) -> (i32, i32, i32) {
    %c0_i32 = arith.constant 0 : i32
    %c0_i32_0 = arith.constant 0 : i32
    %c0_i32_1 = arith.constant 0 : i32
    %c0_i32_2 = arith.constant 0 : i32
    return %c0_i32, %c0_i32_0, %c0_i32_1 : i32, i32, i32
  }
  func.func @transform_5(%arg0: i32) -> (i32, i32) {
    %c0_i32 = arith.constant 0 : i32
    %c0_i32_0 = arith.constant 0 : i32
    %c0_i32_1 = arith.constant 0 : i32
    return %c0_i32, %c0_i32_0 : i32, i32
  }
  func.func @transform_6(%arg0: i32) -> (i32, i32) {
    %c0_i32 = arith.constant 0 : i32
    %c0_i32_0 = arith.constant 0 : i32
    %c0_i32_1 = arith.constant 0 : i32
    return %c0_i32, %c0_i32_0 : i32, i32
  }
  func.func @transform_7(%arg0: i32) -> (i32, i32) {
    %c0_i32 = arith.constant 0 : i32
    %c0_i32_0 = arith.constant 0 : i32
    %c0_i32_1 = arith.constant 0 : i32
    return %c0_i32, %c0_i32_0 : i32, i32
  }
  func.func @transform_8(%arg0: i32) -> (i32, i32) {
    %c0_i32 = arith.constant 0 : i32
    %c0_i32_0 = arith.constant 0 : i32
    %c0_i32_1 = arith.constant 0 : i32
    return %c0_i32, %c0_i32_0 : i32, i32
  }
  func.func @transform_9(%arg0: i32) -> (i32, i32) {
    %c0_i32 = arith.constant 0 : i32
    %c0_i32_0 = arith.constant 0 : i32
    %c0_i32_1 = arith.constant 0 : i32
    return %c0_i32, %c0_i32_0 : i32, i32
  }
  func.func @transform_10(%arg0: i32) -> (i32, i32) {
    %c0_i32 = arith.constant 0 : i32
    %c0_i32_0 = arith.constant 0 : i32
    %c0_i32_1 = arith.constant 0 : i32
    return %c0_i32, %c0_i32_0 : i32, i32
  }
  func.func @transform_11(%arg0: i32) -> (i32, i32) {
    %c0_i32 = arith.constant 0 : i32
    %c0_i32_0 = arith.constant 0 : i32
    %c0_i32_1 = arith.constant 0 : i32
    return %c0_i32, %c0_i32_0 : i32, i32
  }
  func.func @transform_12(%arg0: i32) -> (i32, i32) {
    %c0_i32 = arith.constant 0 : i32
    %c0_i32_0 = arith.constant 0 : i32
    %c0_i32_1 = arith.constant 0 : i32
    return %c0_i32, %c0_i32_0 : i32, i32
  }
  func.func @transform_13(%arg0: i32) -> (i32, i32) {
    %c0_i32 = arith.constant 0 : i32
    %c0_i32_0 = arith.constant 0 : i32
    %c0_i32_1 = arith.constant 0 : i32
    return %c0_i32, %c0_i32_0 : i32, i32
  }
  func.func @transform_14(%arg0: i32) -> (i32, i32) {
    %c0_i32 = arith.constant 0 : i32
    %c0_i32_0 = arith.constant 0 : i32
    return %arg0, %c0_i32 : i32, i32
  }
  func.func @transform_15(%arg0: i32) -> (i32, i32) {
    %c0_i32 = arith.constant 0 : i32
    %c0_i32_0 = arith.constant 0 : i32
    return %arg0, %c0_i32 : i32, i32
  }
}

</mosaic_0001>

<llo_original>
// kernel: tpu_custom_call.1
$region0: #{tpu_custom_call.1}
  #allocation0 [shape = 'u32[]', space=smem, size = 0x4, offset = 0x4, fixed_abs, tag = 'smem constant byte address 0x4 - core index']
  #allocation1 [shape = 'u32[144,128]{1,0:T(1,128)}', space=vmem, size = 0x12000, scoped, tag = 'internal scratch']
  %s0 = inlined_call_operand.hbm [shape: f32[16,32], index: 0, kind: input, shape index: {}]
  %s1 = inlined_call_operand.vmem [shape: bf16[32,384], index: 1, kind: input, shape index: {}]
  %s2 = inlined_call_operand.vmem [shape: f32[1,384], index: 2, kind: input, shape index: {}]
  %s3 = inlined_call_operand.vmem [shape: f32[8,8], index: 3, kind: input, shape index: {}]
  %s4 = inlined_call_operand.hbm [shape: bf16[4,32,32], index: 4, kind: input, shape index: {}]
  %s5 = inlined_call_operand.vmem [shape: f32[1,32], index: 5, kind: input, shape index: {}]
  %s6 = inlined_call_operand.hbm [shape: bf16[32,64], index: 6, kind: input, shape index: {}]
  %s7 = inlined_call_operand.vmem [shape: f32[1,64], index: 7, kind: input, shape index: {}]
  %s8 = inlined_call_operand.vmem [shape: bf16[64,32], index: 8, kind: input, shape index: {}]
  %s9 = inlined_call_operand.vmem [shape: f32[1,32], index: 9, kind: input, shape index: {}]
  %s10 = inlined_call_operand.vmem [shape: f32[1,32], index: 10, kind: input, shape index: {}]
  %s11 = inlined_call_operand.vmem [shape: f32[1,32], index: 11, kind: input, shape index: {}]
  %s12 = inlined_call_operand.vmem [shape: f32[1,32], index: 12, kind: input, shape index: {}]
  %s13 = inlined_call_operand.vmem [shape: f32[1,32], index: 13, kind: input, shape index: {}]
  %s14 = inlined_call_operand.hbm [shape: f32[16,32], index: 14, kind: output, shape index: {0}]
  %s15 = inlined_call_operand.hbm [shape: bf16[16,32], index: 15, kind: output, shape index: {1}]
  %16 = xla_tuple %s14, %s15
  %s17 = sld [smem:[#allocation0]]
  $region109: #{tpu_custom_call.1} parent=0
    _
  %s19 = ssub.s32 1, %s17
  %s20 = scalar_select 0, %s19, %s17
  $region1: #{tpu_custom_call.1} parent=0
    #allocation2 [shape = 'u8[8192]{0}', space=vmem, size = 0x2000, scoped, tag = 'input window, operand 0']
    #allocation3 [shape = 's32[2]{0}', space=sflag, size = 0x8, scoped, tag = 'scoped memory for tpu_custom_call.1']
    #allocation4 [shape = 's32[2]{0}', space=sflag, size = 0x8, scoped, tag = 'scoped memory for tpu_custom_call.1']
    #allocation5 [shape = 'u8[32768]{0}', space=vmem, size = 0x8000, scoped, tag = 'input window, operand 4, single buffered']
    #allocation6 [shape = 's32[1]{0}', space=sflag, size = 0x4, scoped, tag = 'scoped memory for tpu_custom_call.1']
    #allocation7 [shape = 'u8[8192]{0}', space=vmem, size = 0x2000, scoped, tag = 'input window, operand 6, single buffered']
    #allocation8 [shape = 'u8[8192]{0}', space=vmem, size = 0x2000, scoped, tag = 'output window, operand 0']
    #allocation9 [shape = 'u8[4096]{0}', space=vmem, size = 0x1000, scoped, tag = 'output window, operand 1']
    #allocation10 [shape = 's32[2]{0}', space=sflag, size = 0x8, scoped, tag = 'scoped memory for tpu_custom_call.1']
    %21 = vsyncpa [#allocation3], 0
    %s22 = scalar_lea.sflag [#allocation3], 1
    %23 = vsyncpa %s22, 0
    %24 = vsyncpa [#allocation6], 0
    %25 = vsyncpa [#allocation4], 0
    %s26 = scalar_lea.sflag [#allocation4], 1
    %27 = vsyncpa %s26, 0
    %28 = vsyncpa [#allocation10], 0
    %s29 = scalar_lea.sflag [#allocation10], 1
    %30 = vsyncpa %s29, 0
    loop: start=0, step=1, limit=4
    $region2: #{tpu_custom_call.1} parent=1 // loop_pre_header
      _
    $region3: #{tpu_custom_call.1} parent=1 // loop_header
      %s32 = sphi 0, %s36
      %p33 = scmp.ge.s32.totalorder %s32, 4
      %s42 = sphi 0, %s44
      %s45 = sphi 0, %s42
      %s46 = sphi 0, %s45
      %s62 = sphi 0, %s46
      %s66 = sphi 0, %s66
      %s68 = sphi 0, %s66
      %s69 = sphi 0, %s68
      %s83 = sphi 0, %s69
      %s87 = sphi 0, %s87
      %s89 = sphi 0, %s87
      %s90 = sphi 0, %s89
      %s104 = sphi 0, %s90
      %s108 = sphi 0, %s108
      %s110 = sphi 0, %s108
      %s111 = sphi 0, %s110
      %s125 = sphi 0, %s111
      %s129 = sphi 0, %s129
      %s131 = sphi 0, %s129
      %s132 = sphi 0, %s131
      %s146 = sphi 0, %s132
      %s150 = sphi 0, %s150
      %s152 = sphi 0, %s150
      %s153 = sphi 0, %s152
      %s167 = sphi 0, %s153
      %s171 = sphi 0, %s171
      %s173 = sphi 0, %s171
      %s174 = sphi 0, %s173
      %s188 = sphi 0, %s174
      %s192 = sphi 0, %s192
      %s194 = sphi 0, %s192
      %s195 = sphi 0, %s194
      %s209 = sphi 0, %s195
      %s213 = sphi 0, %s213
      %s215 = sphi 0, %s213
      %s216 = sphi 0, %s215
      %s230 = sphi 0, %s216
      %s234 = sphi 0, %s234
      %s236 = sphi 0, %s234
      %s237 = sphi 0, %s236
      %s251 = sphi 0, %s237
      %s255 = sphi 0, %s255
      %s257 = sphi 0, %s255
      %s258 = sphi 0, %s257
      %s272 = sphi 0, %s258
      %s276 = sphi 0, %s276
      %s278 = sphi 0, %s276
      %s279 = sphi 0, %s278
      %s293 = sphi 0, %s279
      %s297 = sphi 0, %s297
      %s299 = sphi 0, %s297
      %s300 = sphi 0, %s299
      %s314 = sphi 0, %s300
      %s318 = sphi 0, %s318
      %s320 = sphi 0, %s318
      %s321 = sphi 0, %s320
      %s335 = sphi 0, %s321
      %s341 = sphi 0, %s343
      %s344 = sphi 0, %s341
      %s345 = sphi 0, %s344
      %s361 = sphi 0, %s345
      %s367 = sphi 0, %s369
      %s370 = sphi 0, %s367
      %s371 = sphi 0, %s370
      %s387 = sphi 0, %s371
    $region4: #{tpu_custom_call.1} parent=1 // loop_header_branch
      %35 = sbr.rel (%p33) target = $region8
    $region5: #{tpu_custom_call.1} parent=1 // loop_body
      %s37 = ssub.s32 %s32, 1
      %s38 = ssub.s32 %s32, 2
      %s39 = sadd.s32 %s32, 1
      %s40 = ssub.s32 %s32, %s39
      %p41 = scmp.eq.s32.totalorder %s40, 0
      %s43 = sadd.s32 %s42, 1
      %s44 = scalar_select %p41, %s42, %s43
      %p47 = pneg %p41
      %p48 = scmp.eq.s32.totalorder %s32, 1
      %p49 = por %p47, %p48
      %p50 = scmp.ne.s32.totalorder %s42, %s45
      %p51 = scmp.eq.s32.totalorder %s32, 0
      %p52 = por %p50, %p51
      %p53 = scmp.ne.s32.totalorder %s42, %s45
      %p54 = scmp.eq.s32.totalorder %s37, 1
      %p55 = por %p53, %p54
      %p56 = scmp.ne.s32.totalorder %s45, %s46
      %p57 = scmp.eq.s32.totalorder %s37, 0
      %p58 = por %p56, %p57
      %p59 = scmp.ne.s32.totalorder %s45, %s46
      %p60 = scmp.eq.s32.totalorder %s38, 1
      %p61 = por %p59, %p60
      %p63 = scmp.ne.s32.totalorder %s46, %s62
      %p64 = scmp.eq.s32.totalorder %s38, 0
      %p65 = por %p63, %p64
      %s67 = sadd.s32 %s66, 1
      %p70 = scmp.eq.s32.totalorder %s32, 1
      %p71 = scmp.ne.s32.totalorder %s66, %s68
      %p72 = scmp.eq.s32.totalorder %s32, 0
      %p73 = por %p71, %p72
      %p74 = scmp.ne.s32.totalorder %s66, %s68
      %p75 = scmp.eq.s32.totalorder %s37, 1
      %p76 = por %p74, %p75
      %p77 = scmp.ne.s32.totalorder %s68, %s69
      %p78 = scmp.eq.s32.totalorder %s37, 0
      %p79 = por %p77, %p78
      %p80 = scmp.ne.s32.totalorder %s68, %s69
      %p81 = scmp.eq.s32.totalorder %s38, 1
      %p82 = por %p80, %p81
      %p84 = scmp.ne.s32.totalorder %s69, %s83
      %p85 = scmp.eq.s32.totalorder %s38, 0
      %p86 = por %p84, %p85
      %s88 = sadd.s32 %s87, 1
      %p91 = scmp.eq.s32.totalorder %s32, 1
      %p92 = scmp.ne.s32.totalorder %s87, %s89
      %p93 = scmp.eq.s32.totalorder %s32, 0
      %p94 = por %p92, %p93
      %p95 = scmp.ne.s32.totalorder %s87, %s89
      %p96 = scmp.eq.s32.totalorder %s37, 1
      %p97 = por %p95, %p96
      %p98 = scmp.ne.s32.totalorder %s89, %s90
      %p99 = scmp.eq.s32.totalorder %s37, 0
      %p100 = por %p98, %p99
      %p101 = scmp.ne.s32.totalorder %s89, %s90
      %p102 = scmp.eq.s32.totalorder %s38, 1
      %p103 = por %p101, %p102
      %p105 = scmp.ne.s32.totalorder %s90, %s104
      %p106 = scmp.eq.s32.totalorder %s38, 0
      %p107 = por %p105, %p106
      %s109 = sadd.s32 %s108, 1
      %p112 = scmp.eq.s32.totalorder %s32, 1
      %p113 = scmp.ne.s32.totalorder %s108, %s110
      %p114 = scmp.eq.s32.totalorder %s32, 0
      %p115 = por %p113, %p114
      %p116 = scmp.ne.s32.totalorder %s108, %s110
      %p117 = scmp.eq.s32.totalorder %s37, 1
      %p118 = por %p116, %p117
      %p119 = scmp.ne.s32.totalorder %s110, %s111
      %p120 = scmp.eq.s32.totalorder %s37, 0
      %p121 = por %p119, %p120
      %p122 = scmp.ne.s32.totalorder %s110, %s111
      %p123 = scmp.eq.s32.totalorder %s38, 1
      %p124 = por %p122, %p123
      %p126 = scmp.ne.s32.totalorder %s111, %s125
      %p127 = scmp.eq.s32.totalorder %s38, 0
      %p128 = por %p126, %p127
      %s130 = sadd.s32 %s129, 1
      %p133 = scmp.eq.s32.totalorder %s32, 1
      %p134 = scmp.ne.s32.totalorder %s129, %s131
      %p135 = scmp.eq.s32.totalorder %s32, 0
      %p136 = por %p134, %p135
      %p137 = scmp.ne.s32.totalorder %s129, %s131
      %p138 = scmp.eq.s32.totalorder %s37, 1
      %p139 = por %p137, %p138
      %p140 = scmp.ne.s32.totalorder %s131, %s132
      %p141 = scmp.eq.s32.totalorder %s37, 0
      %p142 = por %p140, %p141
      %p143 = scmp.ne.s32.totalorder %s131, %s132
      %p144 = scmp.eq.s32.totalorder %s38, 1
      %p145 = por %p143, %p144
      %p147 = scmp.ne.s32.totalorder %s132, %s146
      %p148 = scmp.eq.s32.totalorder %s38, 0
      %p149 = por %p147, %p148
      %s151 = sadd.s32 %s150, 1
      %p154 = scmp.eq.s32.totalorder %s32, 1
      %p155 = scmp.ne.s32.totalorder %s150, %s152
      %p156 = scmp.eq.s32.totalorder %s32, 0
      %p157 = por %p155, %p156
      %p158 = scmp.ne.s32.totalorder %s150, %s152
      %p159 = scmp.eq.s32.totalorder %s37, 1
      %p160 = por %p158, %p159
      %p161 = scmp.ne.s32.totalorder %s152, %s153
      %p162 = scmp.eq.s32.totalorder %s37, 0
      %p163 = por %p161, %p162
      %p164 = scmp.ne.s32.totalorder %s152, %s153
      %p165 = scmp.eq.s32.totalorder %s38, 1
      %p166 = por %p164, %p165
      %p168 = scmp.ne.s32.totalorder %s153, %s167
      %p169 = scmp.eq.s32.totalorder %s38, 0
      %p170 = por %p168, %p169
      %s172 = sadd.s32 %s171, 1
      %p175 = scmp.eq.s32.totalorder %s32, 1
      %p176 = scmp.ne.s32.totalorder %s171, %s173
      %p177 = scmp.eq.s32.totalorder %s32, 0
      %p178 = por %p176, %p177
      %p179 = scmp.ne.s32.totalorder %s171, %s173
      %p180 = scmp.eq.s32.totalorder %s37, 1
      %p181 = por %p179, %p180
      %p182 = scmp.ne.s32.totalorder %s173, %s174
      %p183 = scmp.eq.s32.totalorder %s37, 0
      %p184 = por %p182, %p183
      %p185 = scmp.ne.s32.totalorder %s173, %s174
      %p186 = scmp.eq.s32.totalorder %s38, 1
      %p187 = por %p185, %p186
      %p189 = scmp.ne.s32.totalorder %s174, %s188
      %p190 = scmp.eq.s32.totalorder %s38, 0
      %p191 = por %p189, %p190
      %s193 = sadd.s32 %s192, 1
      %p196 = scmp.eq.s32.totalorder %s32, 1
      %p197 = scmp.ne.s32.totalorder %s192, %s194
      %p198 = scmp.eq.s32.totalorder %s32, 0
      %p199 = por %p197, %p198
      %p200 = scmp.ne.s32.totalorder %s192, %s194
      %p201 = scmp.eq.s32.totalorder %s37, 1
      %p202 = por %p200, %p201
      %p203 = scmp.ne.s32.totalorder %s194, %s195
      %p204 = scmp.eq.s32.totalorder %s37, 0
      %p205 = por %p203, %p204
      %p206 = scmp.ne.s32.totalorder %s194, %s195
      %p207 = scmp.eq.s32.totalorder %s38, 1
      %p208 = por %p206, %p207
      %p210 = scmp.ne.s32.totalorder %s195, %s209
      %p211 = scmp.eq.s32.totalorder %s38, 0
      %p212 = por %p210, %p211
      %s214 = sadd.s32 %s213, 1
      %p217 = scmp.eq.s32.totalorder %s32, 1
      %p218 = scmp.ne.s32.totalorder %s213, %s215
      %p219 = scmp.eq.s32.totalorder %s32, 0
      %p220 = por %p218, %p219
      %p221 = scmp.ne.s32.totalorder %s213, %s215
      %p222 = scmp.eq.s32.totalorder %s37, 1
      %p223 = por %p221, %p222
      %p224 = scmp.ne.s32.totalorder %s215, %s216
      %p225 = scmp.eq.s32.totalorder %s37, 0
      %p226 = por %p224, %p225
      %p227 = scmp.ne.s32.totalorder %s215, %s216
      %p228 = scmp.eq.s32.totalorder %s38, 1
      %p229 = por %p227, %p228
      %p231 = scmp.ne.s32.totalorder %s216, %s230
      %p232 = scmp.eq.s32.totalorder %s38, 0
      %p233 = por %p231, %p232
      %s235 = sadd.s32 %s234, 1
      %p238 = scmp.eq.s32.totalorder %s32, 1
      %p239 = scmp.ne.s32.totalorder %s234, %s236
      %p240 = scmp.eq.s32.totalorder %s32, 0
      %p241 = por %p239, %p240
      %p242 = scmp.ne.s32.totalorder %s234, %s236
      %p243 = scmp.eq.s32.totalorder %s37, 1
      %p244 = por %p242, %p243
      %p245 = scmp.ne.s32.totalorder %s236, %s237
      %p246 = scmp.eq.s32.totalorder %s37, 0
      %p247 = por %p245, %p246
      %p248 = scmp.ne.s32.totalorder %s236, %s237
      %p249 = scmp.eq.s32.totalorder %s38, 1
      %p250 = por %p248, %p249
      %p252 = scmp.ne.s32.totalorder %s237, %s251
      %p253 = scmp.eq.s32.totalorder %s38, 0
      %p254 = por %p252, %p253
      %s256 = sadd.s32 %s255, 1
      %p259 = scmp.eq.s32.totalorder %s32, 1
      %p260 = scmp.ne.s32.totalorder %s255, %s257
      %p261 = scmp.eq.s32.totalorder %s32, 0
      %p262 = por %p260, %p261
      %p263 = scmp.ne.s32.totalorder %s255, %s257
      %p264 = scmp.eq.s32.totalorder %s37, 1
      %p265 = por %p263, %p264
      %p266 = scmp.ne.s32.totalorder %s257, %s258
      %p267 = scmp.eq.s32.totalorder %s37, 0
      %p268 = por %p266, %p267
      %p269 = scmp.ne.s32.totalorder %s257, %s258
      %p270 = scmp.eq.s32.totalorder %s38, 1
      %p271 = por %p269, %p270
      %p273 = scmp.ne.s32.totalorder %s258, %s272
      %p274 = scmp.eq.s32.totalorder %s38, 0
      %p275 = por %p273, %p274
      %s277 = sadd.s32 %s276, 1
      %p280 = scmp.eq.s32.totalorder %s32, 1
      %p281 = scmp.ne.s32.totalorder %s276, %s278
      %p282 = scmp.eq.s32.totalorder %s32, 0
      %p283 = por %p281, %p282
      %p284 = scmp.ne.s32.totalorder %s276, %s278
      %p285 = scmp.eq.s32.totalorder %s37, 1
      %p286 = por %p284, %p285
      %p287 = scmp.ne.s32.totalorder %s278, %s279
      %p288 = scmp.eq.s32.totalorder %s37, 0
      %p289 = por %p287, %p288
      %p290 = scmp.ne.s32.totalorder %s278, %s279
      %p291 = scmp.eq.s32.totalorder %s38, 1
      %p292 = por %p290, %p291
      %p294 = scmp.ne.s32.totalorder %s279, %s293
      %p295 = scmp.eq.s32.totalorder %s38, 0
      %p296 = por %p294, %p295
      %s298 = sadd.s32 %s297, 1
      %p301 = scmp.eq.s32.totalorder %s32, 1
      %p302 = scmp.ne.s32.totalorder %s297, %s299
      %p303 = scmp.eq.s32.totalorder %s32, 0
      %p304 = por %p302, %p303
      %p305 = scmp.ne.s32.totalorder %s297, %s299
      %p306 = scmp.eq.s32.totalorder %s37, 1
      %p307 = por %p305, %p306
      %p308 = scmp.ne.s32.totalorder %s299, %s300
      %p309 = scmp.eq.s32.totalorder %s37, 0
      %p310 = por %p308, %p309
      %p311 = scmp.ne.s32.totalorder %s299, %s300
      %p312 = scmp.eq.s32.totalorder %s38, 1
      %p313 = por %p311, %p312
      %p315 = scmp.ne.s32.totalorder %s300, %s314
      %p316 = scmp.eq.s32.totalorder %s38, 0
      %p317 = por %p315, %p316
      %s319 = sadd.s32 %s318, 1
      %p322 = scmp.eq.s32.totalorder %s32, 1
      %p323 = scmp.ne.s32.totalorder %s318, %s320
      %p324 = scmp.eq.s32.totalorder %s32, 0
      %p325 = por %p323, %p324
      %p326 = scmp.ne.s32.totalorder %s318, %s320
      %p327 = scmp.eq.s32.totalorder %s37, 1
      %p328 = por %p326, %p327
      %p329 = scmp.ne.s32.totalorder %s320, %s321
      %p330 = scmp.eq.s32.totalorder %s37, 0
      %p331 = por %p329, %p330
      %p332 = scmp.ne.s32.totalorder %s320, %s321
      %p333 = scmp.eq.s32.totalorder %s38, 1
      %p334 = por %p332, %p333
      %p336 = scmp.ne.s32.totalorder %s321, %s335
      %p337 = scmp.eq.s32.totalorder %s38, 0
      %p338 = por %p336, %p337
      %s339 = ssub.s32 %s32, %s39
      %p340 = scmp.eq.s32.totalorder %s339, 0
      %s342 = sadd.s32 %s341, 1
      %s343 = scalar_select %p340, %s341, %s342
      %p346 = pneg %p340
      %p347 = scmp.eq.s32.totalorder %s32, 1
      %p348 = por %p346, %p347
      %p349 = scmp.ne.s32.totalorder %s341, %s344
      %p350 = scmp.eq.s32.totalorder %s32, 0
      %p351 = por %p349, %p350
      %p352 = scmp.ne.s32.totalorder %s341, %s344
      %p353 = scmp.eq.s32.totalorder %s37, 1
      %p354 = por %p352, %p353
      %p355 = scmp.ne.s32.totalorder %s344, %s345
      %p356 = scmp.eq.s32.totalorder %s37, 0
      %p357 = por %p355, %p356
      %p358 = scmp.ne.s32.totalorder %s344, %s345
      %p359 = scmp.eq.s32.totalorder %s38, 1
      %p360 = por %p358, %p359
      %p362 = scmp.ne.s32.totalorder %s345, %s361
      %p363 = scmp.eq.s32.totalorder %s38, 0
      %p364 = por %p362, %p363
      %s365 = ssub.s32 %s32, %s39
      %p366 = scmp.eq.s32.totalorder %s365, 0
      %s368 = sadd.s32 %s367, 1
      %s369 = scalar_select %p366, %s367, %s368
      %p372 = pneg %p366
      %p373 = scmp.eq.s32.totalorder %s32, 1
      %p374 = por %p372, %p373
      %p375 = scmp.ne.s32.totalorder %s367, %s370
      %p376 = scmp.eq.s32.totalorder %s32, 0
      %p377 = por %p375, %p376
      %p378 = scmp.ne.s32.totalorder %s367, %s370
      %p379 = scmp.eq.s32.totalorder %s37, 1
      %p380 = por %p378, %p379
      %p381 = scmp.ne.s32.totalorder %s370, %s371
      %p382 = scmp.eq.s32.totalorder %s37, 0
      %p383 = por %p381, %p382
      %p384 = scmp.ne.s32.totalorder %s370, %s371
      %p385 = scmp.eq.s32.totalorder %s38, 1
      %p386 = por %p384, %p385
      %p388 = scmp.ne.s32.totalorder %s371, %s387
      %p389 = scmp.eq.s32.totalorder %s38, 0
      %p390 = por %p388, %p389
      %p391 = scmp.le.s32.totalorder 1, %s32
      %p392 = scmp.lt.s32.totalorder %s32, 3
      %p393 = pnand %p391, %p392
      %p394 = pneg %p393
      // Predicated region
      $region9: #{tpu_custom_call.1} parent=5 // pred_check
        _
      $region10: #{tpu_custom_call.1} parent=5 // pred_check_branch
        %396 = sbr.rel (%p393) target = $region12
      $region11: #{tpu_custom_call.1} parent=5 // pred_region
        %s397 = ssub.s32 %s32, 1
        // Predicated region
        $region13: #{tpu_custom_call.1} parent=11 // pred_check
          %p398 = pneg %p79
        $region14: #{tpu_custom_call.1} parent=11 // pred_check_branch
          %400 = sbr.rel (%p398) target = $region16
        $region15: #{tpu_custom_call.1} parent=11 // pred_region
          _
        $region16: #{tpu_custom_call.1} parent=11 // pred_fallthru
          _
        // Predicated region
        $region17: #{tpu_custom_call.1} parent=11 // pred_check
          %p401 = pneg %p100
        $region18: #{tpu_custom_call.1} parent=11 // pred_check_branch
          %403 = sbr.rel (%p401) target = $region20
        $region19: #{tpu_custom_call.1} parent=11 // pred_region
          _
        $region20: #{tpu_custom_call.1} parent=11 // pred_fallthru
          _
        // Predicated region
        $region21: #{tpu_custom_call.1} parent=11 // pred_check
          %p404 = pneg %p121
        $region22: #{tpu_custom_call.1} parent=11 // pred_check_branch
          %406 = sbr.rel (%p404) target = $region24
        $region23: #{tpu_custom_call.1} parent=11 // pred_region
          _
        $region24: #{tpu_custom_call.1} parent=11 // pred_fallthru
          _
        // Predicated region
        $region25: #{tpu_custom_call.1} parent=11 // pred_check
          %p407 = pneg %p142
        $region26: #{tpu_custom_call.1} parent=11 // pred_check_branch
          %409 = sbr.rel (%p407) target = $region28
        $region27: #{tpu_custom_call.1} parent=11 // pred_region
          %s411 = ssub.s32 1024, 1024
          %412 = vsyncadd [#allocation6], %s411
          %s413 = sshll.u32 [#allocation5], 4
          %s414 = int_to_ptr.vmem [resolvable:$true] %s413
          %419 = dma.hbm_to_vmem [thread:$0]  %s4, 1024, %s414, [#allocation6], 64, 64, 4
        $region28: #{tpu_custom_call.1} parent=11 // pred_fallthru
          _
        // Predicated region
        $region29: #{tpu_custom_call.1} parent=11 // pred_check
          %p420 = pneg %p163
        $region30: #{tpu_custom_call.1} parent=11 // pred_check_branch
          %422 = sbr.rel (%p420) target = $region32
        $region31: #{tpu_custom_call.1} parent=11 // pred_region
          _
        $region32: #{tpu_custom_call.1} parent=11 // pred_fallthru
          _
        // Predicated region
        $region33: #{tpu_custom_call.1} parent=11 // pred_check
          %p423 = pneg %p184
        $region34: #{tpu_custom_call.1} parent=11 // pred_check_branch
          %425 = sbr.rel (%p423) target = $region36
        $region35: #{tpu_custom_call.1} parent=11 // pred_region
          %s427 = ssub.s32 256, 256
          %428 = vsyncadd [#allocation6], %s427
          %s429 = sshll.u32 [#allocation7], 4
          %s430 = int_to_ptr.vmem [resolvable:$true] %s429
          %435 = dma.hbm_to_vmem [thread:$0]  %s6, 256, %s430, [#allocation6], 64, 64, 4
        $region36: #{tpu_custom_call.1} parent=11 // pred_fallthru
          _
        // Predicated region
        $region37: #{tpu_custom_call.1} parent=11 // pred_check
          %p436 = pneg %p205
        $region38: #{tpu_custom_call.1} parent=11 // pred_check_branch
          %438 = sbr.rel (%p436) target = $region40
        $region39: #{tpu_custom_call.1} parent=11 // pred_region
          _
        $region40: #{tpu_custom_call.1} parent=11 // pred_fallthru
          _
        // Predicated region
        $region41: #{tpu_custom_call.1} parent=11 // pred_check
          %p439 = pneg %p226
        $region42: #{tpu_custom_call.1} parent=11 // pred_check_branch
          %441 = sbr.rel (%p439) target = $region44
        $region43: #{tpu_custom_call.1} parent=11 // pred_region
          _
        $region44: #{tpu_custom_call.1} parent=11 // pred_fallthru
          _
        // Predicated region
        $region45: #{tpu_custom_call.1} parent=11 // pred_check
          %p442 = pneg %p247
        $region46: #{tpu_custom_call.1} parent=11 // pred_check_branch
          %444 = sbr.rel (%p442) target = $region48
        $region47: #{tpu_custom_call.1} parent=11 // pred_region
          _
        $region48: #{tpu_custom_call.1} parent=11 // pred_fallthru
          _
        // Predicated region
        $region49: #{tpu_custom_call.1} parent=11 // pred_check
          %p445 = pneg %p268
        $region50: #{tpu_custom_call.1} parent=11 // pred_check_branch
          %447 = sbr.rel (%p445) target = $region52
        $region51: #{tpu_custom_call.1} parent=11 // pred_region
          _
        $region52: #{tpu_custom_call.1} parent=11 // pred_fallthru
          _
        // Predicated region
        $region53: #{tpu_custom_call.1} parent=11 // pred_check
          %p448 = pneg %p289
        $region54: #{tpu_custom_call.1} parent=11 // pred_check_branch
          %450 = sbr.rel (%p448) target = $region56
        $region55: #{tpu_custom_call.1} parent=11 // pred_region
          _
        $region56: #{tpu_custom_call.1} parent=11 // pred_fallthru
          _
        // Predicated region
        $region57: #{tpu_custom_call.1} parent=11 // pred_check
          %p451 = pneg %p310
        $region58: #{tpu_custom_call.1} parent=11 // pred_check_branch
          %453 = sbr.rel (%p451) target = $region60
        $region59: #{tpu_custom_call.1} parent=11 // pred_region
          _
        $region60: #{tpu_custom_call.1} parent=11 // pred_fallthru
          _
        // Predicated region
        $region61: #{tpu_custom_call.1} parent=11 // pred_check
          %p454 = pneg %p331
        $region62: #{tpu_custom_call.1} parent=11 // pred_check_branch
          %456 = sbr.rel (%p454) target = $region64
        $region63: #{tpu_custom_call.1} parent=11 // pred_region
          _
        $region64: #{tpu_custom_call.1} parent=11 // pred_fallthru
          _
      $region12: #{tpu_custom_call.1} parent=5 // pred_fallthru
        _
      %p457 = scmp.lt.s32.totalorder %s32, 2
      // Predicated region
      $region65: #{tpu_custom_call.1} parent=5 // pred_check
        %p458 = pneg %p457
      $region66: #{tpu_custom_call.1} parent=5 // pred_check_branch
        %460 = sbr.rel (%p458) target = $region68
      $region67: #{tpu_custom_call.1} parent=5 // pred_region
        // Predicated region
        $region69: #{tpu_custom_call.1} parent=67 // pred_check
          %p461 = pneg %p52
        $region70: #{tpu_custom_call.1} parent=67 // pred_check_branch
          %463 = sbr.rel (%p461) target = $region72
        $region71: #{tpu_custom_call.1} parent=67 // pred_region
          %s464 = sand.u32 %s42, 1
          %s465 = scalar_lea.sflag [#allocation3], %s464
          %s466 = sand.u32 %s42, 1
          %s467 = smul.addr %s466, 8
          %s468 = scalar_lea.vmem [#allocation2], %s467
          %s470 = ssub.s32 128, 128
          %471 = vsyncadd %s465, %s470
          %s472 = smul.addr %s32, 128
          %s473 = scalar_lea.hbm %s0, %s472
          %s475 = sshll.u32 %s468, 4
          %s476 = int_to_ptr.vmem [resolvable:$true] %s475
          %478 = dma.hbm_to_vmem [thread:$0]  %s473, 128, %s476, %s465
        $region72: #{tpu_custom_call.1} parent=67 // pred_fallthru
          _
      $region68: #{tpu_custom_call.1} parent=5 // pred_fallthru
        _
      %p479 = scmp.le.s32.totalorder 1, %s32
      %p480 = scmp.lt.s32.totalorder %s32, 3
      %p481 = pnand %p479, %p480
      %p482 = pneg %p481
      // Predicated region
      $region73: #{tpu_custom_call.1} parent=5 // pred_check
        _
      $region74: #{tpu_custom_call.1} parent=5 // pred_check_branch
        %484 = sbr.rel (%p481) target = $region76
      $region75: #{tpu_custom_call.1} parent=5 // pred_region
        %s485 = ssub.s32 %s32, 1
        %s486 = sand.u32 %s45, 1
        %s487 = scalar_lea.sflag [#allocation3], %s486
        %s488 = sand.u32 %s45, 1
        %s489 = smul.addr %s488, 8
        %s490 = scalar_lea.vmem [#allocation2], %s489
        // Predicated region
        $region77: #{tpu_custom_call.1} parent=75 // pred_check
          %p491 = pneg %p58
        $region78: #{tpu_custom_call.1} parent=75 // pred_check_branch
          %493 = sbr.rel (%p491) target = $region80
        $region79: #{tpu_custom_call.1} parent=75 // pred_region
          %494 = dma.done %s487, 128
        $region80: #{tpu_custom_call.1} parent=75 // pred_fallthru
          _
        // Predicated region
        $region81: #{tpu_custom_call.1} parent=75 // pred_check
          %p495 = pneg %p142
        $region82: #{tpu_custom_call.1} parent=75 // pred_check_branch
          %497 = sbr.rel (%p495) target = $region84
        $region83: #{tpu_custom_call.1} parent=75 // pred_region
          %498 = dma.done [#allocation6], 1024
        $region84: #{tpu_custom_call.1} parent=75 // pred_fallthru
          _
        // Predicated region
        $region85: #{tpu_custom_call.1} parent=75 // pred_check
          %p499 = pneg %p184
        $region86: #{tpu_custom_call.1} parent=75 // pred_check_branch
          %501 = sbr.rel (%p499) target = $region88
        $region87: #{tpu_custom_call.1} parent=75 // pred_region
          %502 = dma.done [#allocation6], 256
        $region88: #{tpu_custom_call.1} parent=75 // pred_fallthru
          _
        %s503 = sand.u32 %s45, 1
        %s504 = scalar_lea.sflag [#allocation3], %s503
        %s505 = sand.u32 %s45, 1
        %s506 = smul.addr %s505, 8
        %s507 = scalar_lea.vmem [#allocation2], %s506
        %p508 = pneg %p58
        %p509 = pneg %p55
        %p510 = pneg %p79
        %p511 = pneg %p76
        %p512 = pneg %p100
        %p513 = pneg %p97
        %p514 = pneg %p121
        %p515 = pneg %p118
        %p516 = pneg %p142
        %p517 = pneg %p139
        %p518 = pneg %p163
        %p519 = pneg %p160
        %p520 = pneg %p184
        %p521 = pneg %p181
        %p522 = pneg %p205
        %p523 = pneg %p202
        %p524 = pneg %p226
        %p525 = pneg %p223
        %p526 = pneg %p247
        %p527 = pneg %p244
        %p528 = pneg %p268
        %p529 = pneg %p265
        %p530 = pneg %p289
        %p531 = pneg %p286
        %p532 = pneg %p310
        %p533 = pneg %p307
        %p534 = pneg %p331
        %p535 = pneg %p328
        %p536 = pneg %p357
        %p537 = pneg %p354
        %s538 = sand.u32 %s344, 1
        %s539 = scalar_lea.sflag [#allocation4], %s538
        %s540 = sand.u32 %s344, 1
        %s541 = smul.addr %s540, 8
        %s542 = scalar_lea.vmem [#allocation8], %s541
        %p543 = pneg %p383
        %p544 = pneg %p380
        %s545 = sand.u32 %s370, 1
        %s546 = scalar_lea.sflag [#allocation10], %s545
        %s547 = sand.u32 %s370, 1
        %s548 = smul.addr %s547, 4
        %s549 = scalar_lea.vmem [#allocation9], %s548
        %v551 = vld [vmem:[%s490] sm:$0xff]
        %v552 = vpack.c.bf16 %v551, %v551
        %v553 = vld [vmem:[%s1] sm:$0xff]
        %v554 = vld [vmem:[%s1 + $0x8] sm:$0xf]
        %v555 = vld [vmem:[%s1 + $0xc] sm:$0xff]
        %v556 = vld [vmem:[%s1 + $0x14] sm:$0xf]
        %v557 = vld [vmem:[%s1 + $0x18] sm:$0xff]
        %v558 = vld [vmem:[%s1 + $0x20] sm:$0xf]
        %v559 = vld [vmem:[%s1 + $0x24] sm:$0xff]
        %v560 = vld [vmem:[%s1 + $0x2c] sm:$0xf]
        %v561 = vld [vmem:[%s2] sm:$0x7]
        %v563 = vlaneseq
        %v564 = vshrl.u32 %v563, 7
        %v565 = vsub.s32 0, %v564
        %v566 = vrot.slane %v561, %v565
        %v567 = vlaneseq
        %v568 = vshrl.u32 %v567, 7
        %v569 = vsub.s32 1, %v568
        %v570 = vrot.slane %v561, %v569
        %v571 = vlaneseq
        %v572 = vshrl.u32 %v571, 7
        %v573 = vsub.s32 2, %v572
        %v574 = vrot.slane %v561, %v573
        %v586 = vunpack.c.l.b16 %v553
        %v587 = vunpack.c.h.b16 %v553
        %v588 = vunpack.c.l.b16 %v554
        %v589 = vunpack.c.l.b16 %v555
        %v590 = vunpack.c.h.b16 %v555
        %v591 = vunpack.c.l.b16 %v556
        %v592 = vunpack.c.l.b16 %v557
        %v593 = vunpack.c.h.b16 %v557
        %v594 = vunpack.c.l.b16 %v558
        %v595 = vunpack.c.l.b16 %v559
        %v596 = vunpack.c.h.b16 %v559
        %v597 = vunpack.c.l.b16 %v560
        %v598 = vpack.c.b16 %v589, %v586
        %v599 = vpack.c.b16 %v590, %v587
        %v600 = vpack.c.b16 %v591, %v588
        %v601 = vpack.c.b16 %v595, %v592
        %v602 = vpack.c.b16 %v596, %v593
        %v603 = vpack.c.b16 %v597, %v594
        %vm610 = vcmask 261120
        %v612 = vsel %vm610, %v552, 0
        %614 = vmatprep.subr.bf16.mxu0 %v599
        %615 = vmatpush1.bf16.msra.mxu0 %v598
        %616 = vmatprep.subr.bf16.mxu0 %v602
        %617 = vmatpush1.bf16.msra.mxu0 %v601
        %618 = vmatprep.subr.bf16.mxu0 0
        %619 = vmatpush1.bf16.msra.mxu0 0
        %620 = vmatprep.subr.bf16.mxu0 0
        %621 = vmatpush1.bf16.msra.mxu0 0
        %622 = vmatprep.subr.bf16.mxu0 0
        %623 = vmatpush1.bf16.msra.mxu0 0
        %624 = vmatprep.subr.bf16.mxu0 0
        %625 = vmatpush1.bf16.msra.mxu0 0
        %626 = vmatprep.subr.bf16.mxu0 0
        %627 = vmatpush1.bf16.msra.mxu0 0
        %628 = vmatprep.subr.bf16.mxu0 0
        %629 = vmatpush1.bf16.msra.mxu0 0
        %630 = vmatprep.subr.bf16.mxu0 0
        %631 = vmatpush1.bf16.msra.mxu0 0
        %632 = vmatprep.subr.bf16.mxu0 0
        %633 = vmatpush1.bf16.msra.mxu0 0
        %634 = vmatprep.subr.bf16.mxu0 0
        %635 = vmatpush1.bf16.msra.mxu0 0
        %636 = vmatprep.subr.bf16.mxu0 0
        %637 = vmatpush1.bf16.msra.mxu0 0
        %638 = vmatprep.subr.bf16.mxu0 0
        %639 = vmatpush1.bf16.msra.mxu0 0
        %640 = vmatprep.subr.bf16.mxu0 0
        %641 = vmatpush1.bf16.msra.mxu0 0
        %642 = vmatprep.subr.bf16.mxu0 0
        %643 = vmatpush1.bf16.msra.mxu0 0
        %644 = vmatprep.subr.bf16.mxu0 0
        %645 = vmatpush1.bf16.msra.mxu0 0
        %646 = vmatprep.mubr.bf16.mxu0 0
        %647 = vmatmul.mubr.bf16.gmra.mrb[0].mxu0 %v612
        %v648 = vpop.f32.mrb[0].mxu0
        %v649 = vadd.f32 %v566, %v648
        %v650 = vpop.f32.mrb[0].mxu0
        %v651 = vadd.f32 %v570, %v650
        %v652 = vpop.f32.mrb[0].mxu0
        %v653 = vpop.f32.mrb[0].mxu0
        %654 = vdwg.mxu0
        %655 = vmatprep.subr.bf16.mxu0 0
        %656 = vmatpush1.bf16.msra.mxu0 %v600
        %657 = vmatprep.subr.bf16.mxu0 0
        %658 = vmatpush1.bf16.msra.mxu0 %v603
        %659 = vmatprep.subr.bf16.mxu0 0
        %660 = vmatpush1.bf16.msra.mxu0 0
        %661 = vmatprep.subr.bf16.mxu0 0
        %662 = vmatpush1.bf16.msra.mxu0 0
        %663 = vmatprep.subr.bf16.mxu0 0
        %664 = vmatpush1.bf16.msra.mxu0 0
        %665 = vmatprep.subr.bf16.mxu0 0
        %666 = vmatpush1.bf16.msra.mxu0 0
        %667 = vmatprep.subr.bf16.mxu0 0
        %668 = vmatpush1.bf16.msra.mxu0 0
        %669 = vmatprep.subr.bf16.mxu0 0
        %670 = vmatpush1.bf16.msra.mxu0 0
        %671 = vmatprep.subr.bf16.mxu0 0
        %672 = vmatpush1.bf16.msra.mxu0 0
        %673 = vmatprep.subr.bf16.mxu0 0
        %674 = vmatpush1.bf16.msra.mxu0 0
        %675 = vmatprep.subr.bf16.mxu0 0
        %676 = vmatpush1.bf16.msra.mxu0 0
        %677 = vmatprep.subr.bf16.mxu0 0
        %678 = vmatpush1.bf16.msra.mxu0 0
        %679 = vmatprep.subr.bf16.mxu0 0
        %680 = vmatpush1.bf16.msra.mxu0 0
        %681 = vmatprep.subr.bf16.mxu0 0
        %682 = vmatpush1.bf16.msra.mxu0 0
        %683 = vmatprep.subr.bf16.mxu0 0
        %684 = vmatpush1.bf16.msra.mxu0 0
        %685 = vmatprep.subr.bf16.mxu0 0
        %686 = vmatpush1.bf16.msra.mxu0 0
        %687 = vmatprep.mubr.bf16.mxu0 0
        %688 = vmatmul.mubr.bf16.gmra.mrb[0].mxu0 %v612
        %v689 = vpop.f32.mrb[0].mxu0
        %v690 = vadd.f32 %v574, %v689
        %v691 = vpop.f32.mrb[0].mxu0
        %v692 = vpop.f32.mrb[0].mxu0
        %v693 = vpop.f32.mrb[0].mxu0
        %694 = vdwg.mxu0
        %v695 = vpack.c.bf16 %v649, %v649
        %v696 = vpack.c.bf16 %v651, %v651
        %v697 = vpack.c.bf16 %v690, %v690
        %v698 = vld [vmem:[%s3] sm:$0xff]
        %v700 = vsel %vm610, %v695, 0
        %v703 = vsel %vm610, %v696, 0
        %705 = vmatprep.subr.bf16.mxu0 0
        %706 = vmatpush1.bf16.xpose.msra.mxu0 %v703
        %707 = vmatprep.subr.bf16.mxu0 0
        %708 = vmatpush1.bf16.xpose.msra.mxu0 0
        %709 = vmatprep.subr.bf16.mxu0 0
        %710 = vmatpush1.bf16.xpose.msra.mxu0 0
        %711 = vmatprep.subr.bf16.mxu0 0
        %712 = vmatpush1.bf16.xpose.msra.mxu0 0
        %713 = vmatprep.subr.bf16.mxu0 0
        %714 = vmatpush1.bf16.xpose.msra.mxu0 0
        %715 = vmatprep.subr.bf16.mxu0 0
        %716 = vmatpush1.bf16.xpose.msra.mxu0 0
        %717 = vmatprep.subr.bf16.mxu0 0
        %718 = vmatpush1.bf16.xpose.msra.mxu0 0
        %719 = vmatprep.subr.bf16.mxu0 0
        %720 = vmatpush1.bf16.xpose.msra.mxu0 0
        %721 = vmatprep.subr.bf16.mxu0 0
        %722 = vmatpush1.bf16.xpose.msra.mxu0 0
        %723 = vmatprep.subr.bf16.mxu0 0
        %724 = vmatpush1.bf16.xpose.msra.mxu0 0
        %725 = vmatprep.subr.bf16.mxu0 0
        %726 = vmatpush1.bf16.xpose.msra.mxu0 0
        %727 = vmatprep.subr.bf16.mxu0 0
        %728 = vmatpush1.bf16.xpose.msra.mxu0 0
        %729 = vmatprep.subr.bf16.mxu0 0
        %730 = vmatpush1.bf16.xpose.msra.mxu0 0
        %731 = vmatprep.subr.bf16.mxu0 0
        %732 = vmatpush1.bf16.xpose.msra.mxu0 0
        %733 = vmatprep.subr.bf16.mxu0 0
        %734 = vmatpush1.bf16.xpose.msra.mxu0 0
        %735 = vmatprep.subr.bf16.mxu0 0
        %736 = vmatpush1.bf16.xpose.msra.mxu0 0
        %737 = vmatprep.mubr.bf16.mxu0 0
        %738 = vmatmul.mubr.bf16.gmra.mrb[0].mxu0 %v700
        %v739 = vpop.f32.mrb[0].mxu0
        %v740 = vadd.f32 %v698, %v739
        %v741 = vpop.f32.mrb[0].mxu0
        %v742 = vpop.f32.mrb[0].mxu0
        %v743 = vpop.f32.mrb[0].mxu0
        %744 = vdwg.mxu0
        %vm745 = vcmask 64512
        %v746 = vsel %vm745, %v740, -inf
        %747 = vmax.xlane.f32.xlu0 %v746
        %v748 = vpop.xlane.xlu0 %747
        %v749 = vsub.f32 %v740, %v748
        %v750 = vmul.f32 %v749, 1.442695
        %v751 = vpow.pop %v750
        %v752 = vsel %vm745, %v751, 0.0
        %753 = vadd.xlane.f32.xlu0 %v752
        %v754 = vpop.xlane.xlu0 %753
        %v755 = vrcp.pop %v754
        %v756 = vmul.f32 %v751, %v755
        %v757 = vpack.c.bf16 %v756, %v756
        %v759 = vsel %vm745, %v757, 0
        %vm761 = vcmask 1043456
        %v763 = vsel %vm761, %v697, 0
        %765 = vmatprep.subr.bf16.mxu0 0
        %766 = vmatpush1.bf16.msra.mxu0 %v763
        %767 = vmatprep.subr.bf16.mxu0 0
        %768 = vmatpush1.bf16.msra.mxu0 0
        %769 = vmatprep.subr.bf16.mxu0 0
        %770 = vmatpush1.bf16.msra.mxu0 0
        %771 = vmatprep.subr.bf16.mxu0 0
        %772 = vmatpush1.bf16.msra.mxu0 0
        %773 = vmatprep.subr.bf16.mxu0 0
        %774 = vmatpush1.bf16.msra.mxu0 0
        %775 = vmatprep.subr.bf16.mxu0 0
        %776 = vmatpush1.bf16.msra.mxu0 0
        %777 = vmatprep.subr.bf16.mxu0 0
        %778 = vmatpush1.bf16.msra.mxu0 0
        %779 = vmatprep.subr.bf16.mxu0 0
        %780 = vmatpush1.bf16.msra.mxu0 0
        %781 = vmatprep.subr.bf16.mxu0 0
        %782 = vmatpush1.bf16.msra.mxu0 0
        %783 = vmatprep.subr.bf16.mxu0 0
        %784 = vmatpush1.bf16.msra.mxu0 0
        %785 = vmatprep.subr.bf16.mxu0 0
        %786 = vmatpush1.bf16.msra.mxu0 0
        %787 = vmatprep.subr.bf16.mxu0 0
        %788 = vmatpush1.bf16.msra.mxu0 0
        %789 = vmatprep.subr.bf16.mxu0 0
        %790 = vmatpush1.bf16.msra.mxu0 0
        %791 = vmatprep.subr.bf16.mxu0 0
        %792 = vmatpush1.bf16.msra.mxu0 0
        %793 = vmatprep.subr.bf16.mxu0 0
        %794 = vmatpush1.bf16.msra.mxu0 0
        %795 = vmatprep.subr.bf16.mxu0 0
        %796 = vmatpush1.bf16.msra.mxu0 0
        %797 = vmatprep.mubr.bf16.mxu0 0
        %798 = vmatmul.mubr.bf16.gmra.mrb[0].mxu0 %v759
        %v799 = vpop.f32.mrb[0].mxu0
        %v800 = vadd.f32 0.0, %v799
        %v801 = vpop.f32.mrb[0].mxu0
        %v802 = vpop.f32.mrb[0].mxu0
        %v803 = vpop.f32.mrb[0].mxu0
        %804 = vdwg.mxu0
        %v805 = vpack.c.bf16 %v800, %v800
        %v806 = vld [vmem:[#allocation5] sm:$0xf]
        %v807 = vld [vmem:[#allocation5 + $0x4] sm:$0xf]
        %v808 = vld [vmem:[#allocation5 + $0x8] sm:$0xf]
        %v809 = vld [vmem:[#allocation5 + $0xc] sm:$0xf]
        %811 = vrot.lane.b32.xlu0 %v695, 96
        %v812 = vpop.permute.xlu0 %811
        %814 = vrot.lane.b32.xlu0 %v696, 96
        %v815 = vpop.permute.xlu0 %814
        %v817 = vsel %vm610, %v812, 0
        %v820 = vsel %vm610, %v815, 0
        %822 = vmatprep.subr.bf16.mxu0 0
        %823 = vmatpush1.bf16.xpose.msra.mxu0 %v820
        %824 = vmatprep.subr.bf16.mxu0 0
        %825 = vmatpush1.bf16.xpose.msra.mxu0 0
        %826 = vmatprep.subr.bf16.mxu0 0
        %827 = vmatpush1.bf16.xpose.msra.mxu0 0
        %828 = vmatprep.subr.bf16.mxu0 0
        %829 = vmatpush1.bf16.xpose.msra.mxu0 0
        %830 = vmatprep.subr.bf16.mxu0 0
        %831 = vmatpush1.bf16.xpose.msra.mxu0 0
        %832 = vmatprep.subr.bf16.mxu0 0
        %833 = vmatpush1.bf16.xpose.msra.mxu0 0
        %834 = vmatprep.subr.bf16.mxu0 0
        %835 = vmatpush1.bf16.xpose.msra.mxu0 0
        %836 = vmatprep.subr.bf16.mxu0 0
        %837 = vmatpush1.bf16.xpose.msra.mxu0 0
        %838 = vmatprep.subr.bf16.mxu0 0
        %839 = vmatpush1.bf16.xpose.msra.mxu0 0
        %840 = vmatprep.subr.bf16.mxu0 0
        %841 = vmatpush1.bf16.xpose.msra.mxu0 0
        %842 = vmatprep.subr.bf16.mxu0 0
        %843 = vmatpush1.bf16.xpose.msra.mxu0 0
        %844 = vmatprep.subr.bf16.mxu0 0
        %845 = vmatpush1.bf16.xpose.msra.mxu0 0
        %846 = vmatprep.subr.bf16.mxu0 0
        %847 = vmatpush1.bf16.xpose.msra.mxu0 0
        %848 = vmatprep.subr.bf16.mxu0 0
        %849 = vmatpush1.bf16.xpose.msra.mxu0 0
        %850 = vmatprep.subr.bf16.mxu0 0
        %851 = vmatpush1.bf16.xpose.msra.mxu0 0
        %852 = vmatprep.subr.bf16.mxu0 0
        %853 = vmatpush1.bf16.xpose.msra.mxu0 0
        %854 = vmatprep.mubr.bf16.mxu0 0
        %855 = vmatmul.mubr.bf16.gmra.mrb[0].mxu0 %v817
        %v856 = vpop.f32.mrb[0].mxu0
        %v857 = vadd.f32 %v698, %v856
        %v858 = vpop.f32.mrb[0].mxu0
        %v859 = vpop.f32.mrb[0].mxu0
        %v860 = vpop.f32.mrb[0].mxu0
        %861 = vdwg.mxu0
        %v862 = vsel %vm745, %v857, -inf
        %863 = vmax.xlane.f32.xlu0 %v862
        %v864 = vpop.xlane.xlu0 %863
        %v865 = vsub.f32 %v857, %v864
        %v866 = vmul.f32 %v865, 1.442695
        %v867 = vpow.pop %v866
        %v868 = vsel %vm745, %v867, 0.0
        %869 = vadd.xlane.f32.xlu0 %v868
        %v870 = vpop.xlane.xlu0 %869
        %v871 = vrcp.pop %v870
        %v872 = vmul.f32 %v867, %v871
        %v873 = vpack.c.bf16 %v872, %v872
        %875 = vrot.lane.b32.xlu0 %v697, 96
        %v876 = vpop.permute.xlu0 %875
        %v878 = vsel %vm745, %v873, 0
        %v881 = vsel %vm761, %v876, 0
        %883 = vmatprep.subr.bf16.mxu0 0
        %884 = vmatpush1.bf16.msra.mxu0 %v881
        %885 = vmatprep.subr.bf16.mxu0 0
        %886 = vmatpush1.bf16.msra.mxu0 0
        %887 = vmatprep.subr.bf16.mxu0 0
        %888 = vmatpush1.bf16.msra.mxu0 0
        %889 = vmatprep.subr.bf16.mxu0 0
        %890 = vmatpush1.bf16.msra.mxu0 0
        %891 = vmatprep.subr.bf16.mxu0 0
        %892 = vmatpush1.bf16.msra.mxu0 0
        %893 = vmatprep.subr.bf16.mxu0 0
        %894 = vmatpush1.bf16.msra.mxu0 0
        %895 = vmatprep.subr.bf16.mxu0 0
        %896 = vmatpush1.bf16.msra.mxu0 0
        %897 = vmatprep.subr.bf16.mxu0 0
        %898 = vmatpush1.bf16.msra.mxu0 0
        %899 = vmatprep.subr.bf16.mxu0 0
        %900 = vmatpush1.bf16.msra.mxu0 0
        %901 = vmatprep.subr.bf16.mxu0 0
        %902 = vmatpush1.bf16.msra.mxu0 0
        %903 = vmatprep.subr.bf16.mxu0 0
        %904 = vmatpush1.bf16.msra.mxu0 0
        %905 = vmatprep.subr.bf16.mxu0 0
        %906 = vmatpush1.bf16.msra.mxu0 0
        %907 = vmatprep.subr.bf16.mxu0 0
        %908 = vmatpush1.bf16.msra.mxu0 0
        %909 = vmatprep.subr.bf16.mxu0 0
        %910 = vmatpush1.bf16.msra.mxu0 0
        %911 = vmatprep.subr.bf16.mxu0 0
        %912 = vmatpush1.bf16.msra.mxu0 0
        %913 = vmatprep.subr.bf16.mxu0 0
        %914 = vmatpush1.bf16.msra.mxu0 0
        %915 = vmatprep.mubr.bf16.mxu0 0
        %916 = vmatmul.mubr.bf16.gmra.mrb[0].mxu0 %v878
        %v917 = vpop.f32.mrb[0].mxu0
        %v918 = vadd.f32 0.0, %v917
        %v919 = vpop.f32.mrb[0].mxu0
        %v920 = vpop.f32.mrb[0].mxu0
        %v921 = vpop.f32.mrb[0].mxu0
        %922 = vdwg.mxu0
        %v923 = vpack.c.bf16 %v918, %v918
        %s924 = scalar_lea.vmem [#allocation5], 16
        %v925 = vld [vmem:[%s924] sm:$0xf]
        %v926 = vld [vmem:[%s924 + $0x4] sm:$0xf]
        %v927 = vld [vmem:[%s924 + $0x8] sm:$0xf]
        %v928 = vld [vmem:[%s924 + $0xc] sm:$0xf]
        %v933 = vunpack.c.l.b16 %v925
        %v934 = vunpack.c.l.b16 %v926
        %v935 = vunpack.c.l.b16 %v927
        %v936 = vunpack.c.l.b16 %v928
        %v937 = vpack.c.b16 %v934, %v933
        %v938 = vpack.c.b16 %v936, %v935
        %v942 = vsel %vm610, %v923, 0
        %944 = vmatprep.subr.bf16.mxu0 0
        %945 = vmatpush1.bf16.msra.mxu0 %v937
        %946 = vmatprep.subr.bf16.mxu0 0
        %947 = vmatpush1.bf16.msra.mxu0 %v938
        %948 = vmatprep.subr.bf16.mxu0 0
        %949 = vmatpush1.bf16.msra.mxu0 0
        %950 = vmatprep.subr.bf16.mxu0 0
        %951 = vmatpush1.bf16.msra.mxu0 0
        %952 = vmatprep.subr.bf16.mxu0 0
        %953 = vmatpush1.bf16.msra.mxu0 0
        %954 = vmatprep.subr.bf16.mxu0 0
        %955 = vmatpush1.bf16.msra.mxu0 0
        %956 = vmatprep.subr.bf16.mxu0 0
        %957 = vmatpush1.bf16.msra.mxu0 0
        %958 = vmatprep.subr.bf16.mxu0 0
        %959 = vmatpush1.bf16.msra.mxu0 0
        %960 = vmatprep.subr.bf16.mxu0 0
        %961 = vmatpush1.bf16.msra.mxu0 0
        %962 = vmatprep.subr.bf16.mxu0 0
        %963 = vmatpush1.bf16.msra.mxu0 0
        %964 = vmatprep.subr.bf16.mxu0 0
        %965 = vmatpush1.bf16.msra.mxu0 0
        %966 = vmatprep.subr.bf16.mxu0 0
        %967 = vmatpush1.bf16.msra.mxu0 0
        %968 = vmatprep.subr.bf16.mxu0 0
        %969 = vmatpush1.bf16.msra.mxu0 0
        %970 = vmatprep.subr.bf16.mxu0 0
        %971 = vmatpush1.bf16.msra.mxu0 0
        %972 = vmatprep.subr.bf16.mxu0 0
        %973 = vmatpush1.bf16.msra.mxu0 0
        %974 = vmatprep.subr.bf16.mxu0 0
        %975 = vmatpush1.bf16.msra.mxu0 0
        %976 = vmatprep.mubr.bf16.mxu0 0
        %977 = vmatmul.mubr.bf16.gmra.mrb[0].mxu0 %v942
        %v978 = vpop.f32.mrb[0].mxu0
        %v979 = vadd.f32 0.0, %v978
        %v980 = vpop.f32.mrb[0].mxu0
        %v981 = vpop.f32.mrb[0].mxu0
        %v982 = vpop.f32.mrb[0].mxu0
        %983 = vdwg.mxu0
        %v988 = vunpack.c.l.b16 %v806
        %v989 = vunpack.c.l.b16 %v807
        %v990 = vunpack.c.l.b16 %v808
        %v991 = vunpack.c.l.b16 %v809
        %v992 = vpack.c.b16 %v989, %v988
        %v993 = vpack.c.b16 %v991, %v990
        %v997 = vsel %vm610, %v805, 0
        %999 = vmatprep.subr.bf16.mxu0 0
        %1000 = vmatpush1.bf16.msra.mxu0 %v992
        %1001 = vmatprep.subr.bf16.mxu0 0
        %1002 = vmatpush1.bf16.msra.mxu0 %v993
        %1003 = vmatprep.subr.bf16.mxu0 0
        %1004 = vmatpush1.bf16.msra.mxu0 0
        %1005 = vmatprep.subr.bf16.mxu0 0
        %1006 = vmatpush1.bf16.msra.mxu0 0
        %1007 = vmatprep.subr.bf16.mxu0 0
        %1008 = vmatpush1.bf16.msra.mxu0 0
        %1009 = vmatprep.subr.bf16.mxu0 0
        %1010 = vmatpush1.bf16.msra.mxu0 0
        %1011 = vmatprep.subr.bf16.mxu0 0
        %1012 = vmatpush1.bf16.msra.mxu0 0
        %1013 = vmatprep.subr.bf16.mxu0 0
        %1014 = vmatpush1.bf16.msra.mxu0 0
        %1015 = vmatprep.subr.bf16.mxu0 0
        %1016 = vmatpush1.bf16.msra.mxu0 0
        %1017 = vmatprep.subr.bf16.mxu0 0
        %1018 = vmatpush1.bf16.msra.mxu0 0
        %1019 = vmatprep.subr.bf16.mxu0 0
        %1020 = vmatpush1.bf16.msra.mxu0 0
        %1021 = vmatprep.subr.bf16.mxu0 0
        %1022 = vmatpush1.bf16.msra.mxu0 0
        %1023 = vmatprep.subr.bf16.mxu0 0
        %1024 = vmatpush1.bf16.msra.mxu0 0
        %1025 = vmatprep.subr.bf16.mxu0 0
        %1026 = vmatpush1.bf16.msra.mxu0 0
        %1027 = vmatprep.subr.bf16.mxu0 0
        %1028 = vmatpush1.bf16.msra.mxu0 0
        %1029 = vmatprep.subr.bf16.mxu0 0
        %1030 = vmatpush1.bf16.msra.mxu0 0
        %1031 = vmatprep.mubr.bf16.mxu0 0
        %1032 = vmatmul.mubr.bf16.gmra.mrb[0].mxu0 %v997
        %v1033 = vpop.f32.mrb[0].mxu0
        %v1034 = vadd.f32 %v979, %v1033
        %v1035 = vpop.f32.mrb[0].mxu0
        %v1036 = vpop.f32.mrb[0].mxu0
        %v1037 = vpop.f32.mrb[0].mxu0
        %1038 = vdwg.mxu0
        %1039 = vrot.lane.b32.xlu0 %v695, 64
        %v1040 = vpop.permute.xlu0 %1039
        %1041 = vrot.lane.b32.xlu0 %v696, 64
        %v1042 = vpop.permute.xlu0 %1041
        %v1044 = vsel %vm610, %v1040, 0
        %v1047 = vsel %vm610, %v1042, 0
        %1049 = vmatprep.subr.bf16.mxu0 0
        %1050 = vmatpush1.bf16.xpose.msra.mxu0 %v1047
        %1051 = vmatprep.subr.bf16.mxu0 0
        %1052 = vmatpush1.bf16.xpose.msra.mxu0 0
        %1053 = vmatprep.subr.bf16.mxu0 0
        %1054 = vmatpush1.bf16.xpose.msra.mxu0 0
        %1055 = vmatprep.subr.bf16.mxu0 0
        %1056 = vmatpush1.bf16.xpose.msra.mxu0 0
        %1057 = vmatprep.subr.bf16.mxu0 0
        %1058 = vmatpush1.bf16.xpose.msra.mxu0 0
        %1059 = vmatprep.subr.bf16.mxu0 0
        %1060 = vmatpush1.bf16.xpose.msra.mxu0 0
        %1061 = vmatprep.subr.bf16.mxu0 0
        %1062 = vmatpush1.bf16.xpose.msra.mxu0 0
        %1063 = vmatprep.subr.bf16.mxu0 0
        %1064 = vmatpush1.bf16.xpose.msra.mxu0 0
        %1065 = vmatprep.subr.bf16.mxu0 0
        %1066 = vmatpush1.bf16.xpose.msra.mxu0 0
        %1067 = vmatprep.subr.bf16.mxu0 0
        %1068 = vmatpush1.bf16.xpose.msra.mxu0 0
        %1069 = vmatprep.subr.bf16.mxu0 0
        %1070 = vmatpush1.bf16.xpose.msra.mxu0 0
        %1071 = vmatprep.subr.bf16.mxu0 0
        %1072 = vmatpush1.bf16.xpose.msra.mxu0 0
        %1073 = vmatprep.subr.bf16.mxu0 0
        %1074 = vmatpush1.bf16.xpose.msra.mxu0 0
        %1075 = vmatprep.subr.bf16.mxu0 0
        %1076 = vmatpush1.bf16.xpose.msra.mxu0 0
        %1077 = vmatprep.subr.bf16.mxu0 0
        %1078 = vmatpush1.bf16.xpose.msra.mxu0 0
        %1079 = vmatprep.subr.bf16.mxu0 0
        %1080 = vmatpush1.bf16.xpose.msra.mxu0 0
        %1081 = vmatprep.mubr.bf16.mxu0 0
        %1082 = vmatmul.mubr.bf16.gmra.mrb[0].mxu0 %v1044
        %v1083 = vpop.f32.mrb[0].mxu0
        %v1084 = vadd.f32 %v698, %v1083
        %v1085 = vpop.f32.mrb[0].mxu0
        %v1086 = vpop.f32.mrb[0].mxu0
        %v1087 = vpop.f32.mrb[0].mxu0
        %1088 = vdwg.mxu0
        %v1089 = vsel %vm745, %v1084, -inf
        %1090 = vmax.xlane.f32.xlu0 %v1089
        %v1091 = vpop.xlane.xlu0 %1090
        %v1092 = vsub.f32 %v1084, %v1091
        %v1093 = vmul.f32 %v1092, 1.442695
        %v1094 = vpow.pop %v1093
        %v1095 = vsel %vm745, %v1094, 0.0
        %1096 = vadd.xlane.f32.xlu0 %v1095
        %v1097 = vpop.xlane.xlu0 %1096
        %v1098 = vrcp.pop %v1097
        %v1099 = vmul.f32 %v1094, %v1098
        %v1100 = vpack.c.bf16 %v1099, %v1099
        %1101 = vrot.lane.b32.xlu0 %v697, 64
        %v1102 = vpop.permute.xlu0 %1101
        %v1104 = vsel %vm745, %v1100, 0
        %v1107 = vsel %vm761, %v1102, 0
        %1109 = vmatprep.subr.bf16.mxu0 0
        %1110 = vmatpush1.bf16.msra.mxu0 %v1107
        %1111 = vmatprep.subr.bf16.mxu0 0
        %1112 = vmatpush1.bf16.msra.mxu0 0
        %1113 = vmatprep.subr.bf16.mxu0 0
        %1114 = vmatpush1.bf16.msra.mxu0 0
        %1115 = vmatprep.subr.bf16.mxu0 0
        %1116 = vmatpush1.bf16.msra.mxu0 0
        %1117 = vmatprep.subr.bf16.mxu0 0
        %1118 = vmatpush1.bf16.msra.mxu0 0
        %1119 = vmatprep.subr.bf16.mxu0 0
        %1120 = vmatpush1.bf16.msra.mxu0 0
        %1121 = vmatprep.subr.bf16.mxu0 0
        %1122 = vmatpush1.bf16.msra.mxu0 0
        %1123 = vmatprep.subr.bf16.mxu0 0
        %1124 = vmatpush1.bf16.msra.mxu0 0
        %1125 = vmatprep.subr.bf16.mxu0 0
        %1126 = vmatpush1.bf16.msra.mxu0 0
        %1127 = vmatprep.subr.bf16.mxu0 0
        %1128 = vmatpush1.bf16.msra.mxu0 0
        %1129 = vmatprep.subr.bf16.mxu0 0
        %1130 = vmatpush1.bf16.msra.mxu0 0
        %1131 = vmatprep.subr.bf16.mxu0 0
        %1132 = vmatpush1.bf16.msra.mxu0 0
        %1133 = vmatprep.subr.bf16.mxu0 0
        %1134 = vmatpush1.bf16.msra.mxu0 0
        %1135 = vmatprep.subr.bf16.mxu0 0
        %1136 = vmatpush1.bf16.msra.mxu0 0
        %1137 = vmatprep.subr.bf16.mxu0 0
        %1138 = vmatpush1.bf16.msra.mxu0 0
        %1139 = vmatprep.subr.bf16.mxu0 0
        %1140 = vmatpush1.bf16.msra.mxu0 0
        %1141 = vmatprep.mubr.bf16.mxu0 0
        %1142 = vmatmul.mubr.bf16.gmra.mrb[0].mxu0 %v1104
        %v1143 = vpop.f32.mrb[0].mxu0
        %v1144 = vadd.f32 0.0, %v1143
        %v1145 = vpop.f32.mrb[0].mxu0
        %v1146 = vpop.f32.mrb[0].mxu0
        %v1147 = vpop.f32.mrb[0].mxu0
        %1148 = vdwg.mxu0
        %v1149 = vpack.c.bf16 %v1144, %v1144
        %s1150 = scalar_lea.vmem [#allocation5], 32
        %v1151 = vld [vmem:[%s1150] sm:$0xf]
        %v1152 = vld [vmem:[%s1150 + $0x4] sm:$0xf]
        %v1153 = vld [vmem:[%s1150 + $0x8] sm:$0xf]
        %v1154 = vld [vmem:[%s1150 + $0xc] sm:$0xf]
        %v1159 = vunpack.c.l.b16 %v1151
        %v1160 = vunpack.c.l.b16 %v1152
        %v1161 = vunpack.c.l.b16 %v1153
        %v1162 = vunpack.c.l.b16 %v1154
        %v1163 = vpack.c.b16 %v1160, %v1159
        %v1164 = vpack.c.b16 %v1162, %v1161
        %v1168 = vsel %vm610, %v1149, 0
        %1170 = vmatprep.subr.bf16.mxu0 0
        %1171 = vmatpush1.bf16.msra.mxu0 %v1163
        %1172 = vmatprep.subr.bf16.mxu0 0
        %1173 = vmatpush1.bf16.msra.mxu0 %v1164
        %1174 = vmatprep.subr.bf16.mxu0 0
        %1175 = vmatpush1.bf16.msra.mxu0 0
        %1176 = vmatprep.subr.bf16.mxu0 0
        %1177 = vmatpush1.bf16.msra.mxu0 0
        %1178 = vmatprep.subr.bf16.mxu0 0
        %1179 = vmatpush1.bf16.msra.mxu0 0
        %1180 = vmatprep.subr.bf16.mxu0 0
        %1181 = vmatpush1.bf16.msra.mxu0 0
        %1182 = vmatprep.subr.bf16.mxu0 0
        %1183 = vmatpush1.bf16.msra.mxu0 0
        %1184 = vmatprep.subr.bf16.mxu0 0
        %1185 = vmatpush1.bf16.msra.mxu0 0
        %1186 = vmatprep.subr.bf16.mxu0 0
        %1187 = vmatpush1.bf16.msra.mxu0 0
        %1188 = vmatprep.subr.bf16.mxu0 0
        %1189 = vmatpush1.bf16.msra.mxu0 0
        %1190 = vmatprep.subr.bf16.mxu0 0
        %1191 = vmatpush1.bf16.msra.mxu0 0
        %1192 = vmatprep.subr.bf16.mxu0 0
        %1193 = vmatpush1.bf16.msra.mxu0 0
        %1194 = vmatprep.subr.bf16.mxu0 0
        %1195 = vmatpush1.bf16.msra.mxu0 0
        %1196 = vmatprep.subr.bf16.mxu0 0
        %1197 = vmatpush1.bf16.msra.mxu0 0
        %1198 = vmatprep.subr.bf16.mxu0 0
        %1199 = vmatpush1.bf16.msra.mxu0 0
        %1200 = vmatprep.subr.bf16.mxu0 0
        %1201 = vmatpush1.bf16.msra.mxu0 0
        %1202 = vmatprep.mubr.bf16.mxu0 0
        %1203 = vmatmul.mubr.bf16.gmra.mrb[0].mxu0 %v1168
        %v1204 = vpop.f32.mrb[0].mxu0
        %v1205 = vadd.f32 0.0, %v1204
        %v1206 = vpop.f32.mrb[0].mxu0
        %v1207 = vpop.f32.mrb[0].mxu0
        %v1208 = vpop.f32.mrb[0].mxu0
        %1209 = vdwg.mxu0
        %v1210 = vadd.f32 %v1034, %v1205
        %1211 = vrot.lane.b32.xlu0 %v695, 32
        %v1212 = vpop.permute.xlu0 %1211
        %1213 = vrot.lane.b32.xlu0 %v696, 32
        %v1214 = vpop.permute.xlu0 %1213
        %v1216 = vsel %vm610, %v1212, 0
        %v1219 = vsel %vm610, %v1214, 0
        %1221 = vmatprep.subr.bf16.mxu0 0
        %1222 = vmatpush1.bf16.xpose.msra.mxu0 %v1219
        %1223 = vmatprep.subr.bf16.mxu0 0
        %1224 = vmatpush1.bf16.xpose.msra.mxu0 0
        %1225 = vmatprep.subr.bf16.mxu0 0
        %1226 = vmatpush1.bf16.xpose.msra.mxu0 0
        %1227 = vmatprep.subr.bf16.mxu0 0
        %1228 = vmatpush1.bf16.xpose.msra.mxu0 0
        %1229 = vmatprep.subr.bf16.mxu0 0
        %1230 = vmatpush1.bf16.xpose.msra.mxu0 0
        %1231 = vmatprep.subr.bf16.mxu0 0
        %1232 = vmatpush1.bf16.xpose.msra.mxu0 0
        %1233 = vmatprep.subr.bf16.mxu0 0
        %1234 = vmatpush1.bf16.xpose.msra.mxu0 0
        %1235 = vmatprep.subr.bf16.mxu0 0
        %1236 = vmatpush1.bf16.xpose.msra.mxu0 0
        %1237 = vmatprep.subr.bf16.mxu0 0
        %1238 = vmatpush1.bf16.xpose.msra.mxu0 0
        %1239 = vmatprep.subr.bf16.mxu0 0
        %1240 = vmatpush1.bf16.xpose.msra.mxu0 0
        %1241 = vmatprep.subr.bf16.mxu0 0
        %1242 = vmatpush1.bf16.xpose.msra.mxu0 0
        %1243 = vmatprep.subr.bf16.mxu0 0
        %1244 = vmatpush1.bf16.xpose.msra.mxu0 0
        %1245 = vmatprep.subr.bf16.mxu0 0
        %1246 = vmatpush1.bf16.xpose.msra.mxu0 0
        %1247 = vmatprep.subr.bf16.mxu0 0
        %1248 = vmatpush1.bf16.xpose.msra.mxu0 0
        %1249 = vmatprep.subr.bf16.mxu0 0
        %1250 = vmatpush1.bf16.xpose.msra.mxu0 0
        %1251 = vmatprep.subr.bf16.mxu0 0
        %1252 = vmatpush1.bf16.xpose.msra.mxu0 0
        %1253 = vmatprep.mubr.bf16.mxu0 0
        %1254 = vmatmul.mubr.bf16.gmra.mrb[0].mxu0 %v1216
        %v1255 = vpop.f32.mrb[0].mxu0
        %v1256 = vadd.f32 %v698, %v1255
        %v1257 = vpop.f32.mrb[0].mxu0
        %v1258 = vpop.f32.mrb[0].mxu0
        %v1259 = vpop.f32.mrb[0].mxu0
        %1260 = vdwg.mxu0
        %v1261 = vsel %vm745, %v1256, -inf
        %1262 = vmax.xlane.f32.xlu0 %v1261
        %v1263 = vpop.xlane.xlu0 %1262
        %v1264 = vsub.f32 %v1256, %v1263
        %v1265 = vmul.f32 %v1264, 1.442695
        %v1266 = vpow.pop %v1265
        %v1267 = vsel %vm745, %v1266, 0.0
        %1268 = vadd.xlane.f32.xlu0 %v1267
        %v1269 = vpop.xlane.xlu0 %1268
        %v1270 = vrcp.pop %v1269
        %v1271 = vmul.f32 %v1266, %v1270
        %v1272 = vpack.c.bf16 %v1271, %v1271
        %1273 = vrot.lane.b32.xlu0 %v697, 32
        %v1274 = vpop.permute.xlu0 %1273
        %v1276 = vsel %vm745, %v1272, 0
        %v1279 = vsel %vm761, %v1274, 0
        %1281 = vmatprep.subr.bf16.mxu0 0
        %1282 = vmatpush1.bf16.msra.mxu0 %v1279
        %1283 = vmatprep.subr.bf16.mxu0 0
        %1284 = vmatpush1.bf16.msra.mxu0 0
        %1285 = vmatprep.subr.bf16.mxu0 0
        %1286 = vmatpush1.bf16.msra.mxu0 0
        %1287 = vmatprep.subr.bf16.mxu0 0
        %1288 = vmatpush1.bf16.msra.mxu0 0
        %1289 = vmatprep.subr.bf16.mxu0 0
        %1290 = vmatpush1.bf16.msra.mxu0 0
        %1291 = vmatprep.subr.bf16.mxu0 0
        %1292 = vmatpush1.bf16.msra.mxu0 0
        %1293 = vmatprep.subr.bf16.mxu0 0
        %1294 = vmatpush1.bf16.msra.mxu0 0
        %1295 = vmatprep.subr.bf16.mxu0 0
        %1296 = vmatpush1.bf16.msra.mxu0 0
        %1297 = vmatprep.subr.bf16.mxu0 0
        %1298 = vmatpush1.bf16.msra.mxu0 0
        %1299 = vmatprep.subr.bf16.mxu0 0
        %1300 = vmatpush1.bf16.msra.mxu0 0
        %1301 = vmatprep.subr.bf16.mxu0 0
        %1302 = vmatpush1.bf16.msra.mxu0 0
        %1303 = vmatprep.subr.bf16.mxu0 0
        %1304 = vmatpush1.bf16.msra.mxu0 0
        %1305 = vmatprep.subr.bf16.mxu0 0
        %1306 = vmatpush1.bf16.msra.mxu0 0
        %1307 = vmatprep.subr.bf16.mxu0 0
        %1308 = vmatpush1.bf16.msra.mxu0 0
        %1309 = vmatprep.subr.bf16.mxu0 0
        %1310 = vmatpush1.bf16.msra.mxu0 0
        %1311 = vmatprep.subr.bf16.mxu0 0
        %1312 = vmatpush1.bf16.msra.mxu0 0
        %1313 = vmatprep.mubr.bf16.mxu0 0
        %1314 = vmatmul.mubr.bf16.gmra.mrb[0].mxu0 %v1276
        %v1315 = vpop.f32.mrb[0].mxu0
        %v1316 = vadd.f32 0.0, %v1315
        %v1317 = vpop.f32.mrb[0].mxu0
        %v1318 = vpop.f32.mrb[0].mxu0
        %v1319 = vpop.f32.mrb[0].mxu0
        %1320 = vdwg.mxu0
        %v1321 = vpack.c.bf16 %v1316, %v1316
        %s1322 = scalar_lea.vmem [#allocation5], 48
        %v1323 = vld [vmem:[%s1322] sm:$0xf]
        %v1324 = vld [vmem:[%s1322 + $0x4] sm:$0xf]
        %v1325 = vld [vmem:[%s1322 + $0x8] sm:$0xf]
        %v1326 = vld [vmem:[%s1322 + $0xc] sm:$0xf]
        %v1331 = vunpack.c.l.b16 %v1323
        %v1332 = vunpack.c.l.b16 %v1324
        %v1333 = vunpack.c.l.b16 %v1325
        %v1334 = vunpack.c.l.b16 %v1326
        %v1335 = vpack.c.b16 %v1332, %v1331
        %v1336 = vpack.c.b16 %v1334, %v1333
        %v1340 = vsel %vm610, %v1321, 0
        %1342 = vmatprep.subr.bf16.mxu0 0
        %1343 = vmatpush1.bf16.msra.mxu0 %v1335
        %1344 = vmatprep.subr.bf16.mxu0 0
        %1345 = vmatpush1.bf16.msra.mxu0 %v1336
        %1346 = vmatprep.subr.bf16.mxu0 0
        %1347 = vmatpush1.bf16.msra.mxu0 0
        %1348 = vmatprep.subr.bf16.mxu0 0
        %1349 = vmatpush1.bf16.msra.mxu0 0
        %1350 = vmatprep.subr.bf16.mxu0 0
        %1351 = vmatpush1.bf16.msra.mxu0 0
        %1352 = vmatprep.subr.bf16.mxu0 0
        %1353 = vmatpush1.bf16.msra.mxu0 0
        %1354 = vmatprep.subr.bf16.mxu0 0
        %1355 = vmatpush1.bf16.msra.mxu0 0
        %1356 = vmatprep.subr.bf16.mxu0 0
        %1357 = vmatpush1.bf16.msra.mxu0 0
        %1358 = vmatprep.subr.bf16.mxu0 0
        %1359 = vmatpush1.bf16.msra.mxu0 0
        %1360 = vmatprep.subr.bf16.mxu0 0
        %1361 = vmatpush1.bf16.msra.mxu0 0
        %1362 = vmatprep.subr.bf16.mxu0 0
        %1363 = vmatpush1.bf16.msra.mxu0 0
        %1364 = vmatprep.subr.bf16.mxu0 0
        %1365 = vmatpush1.bf16.msra.mxu0 0
        %1366 = vmatprep.subr.bf16.mxu0 0
        %1367 = vmatpush1.bf16.msra.mxu0 0
        %1368 = vmatprep.subr.bf16.mxu0 0
        %1369 = vmatpush1.bf16.msra.mxu0 0
        %1370 = vmatprep.subr.bf16.mxu0 0
        %1371 = vmatpush1.bf16.msra.mxu0 0
        %1372 = vmatprep.subr.bf16.mxu0 0
        %1373 = vmatpush1.bf16.msra.mxu0 0
        %1374 = vmatprep.mubr.bf16.mxu0 0
        %1375 = vmatmul.mubr.bf16.gmra.mrb[0].mxu0 %v1340
        %v1376 = vpop.f32.mrb[0].mxu0
        %v1377 = vadd.f32 0.0, %v1376
        %v1378 = vpop.f32.mrb[0].mxu0
        %v1379 = vpop.f32.mrb[0].mxu0
        %v1380 = vpop.f32.mrb[0].mxu0
        %1381 = vdwg.mxu0
        %v1382 = vadd.f32 %v1210, %v1377
        %1384 = vrot.lane.b32.xlu0 %v872, 8
        %v1385 = vpop.permute.xlu0 %1384
        %1388 = vrot.lane.b32.xlu0 %v1099, 16
        %v1389 = vpop.permute.xlu0 %1388
        %1392 = vrot.lane.b32.xlu0 %v1271, 24
        %v1393 = vpop.permute.xlu0 %1392
        %v1395 = vsel %vm745, %v756, %v1385
        %vm1396 = vcmask 130048
        %v1397 = vsel %vm1396, %v1395, %v1389
        %vm1398 = vcmask 195584
        %v1399 = vsel %vm1398, %v1397, %v1393
        %v1400 = vpack.c.bf16 %v1399, %v1399
        %vm1401 = vcmask 257024
        %1402 = vst.msk [vmem:[%s549] sm:$0xf] %vm1401, %v1400
        %v1403 = vld [vmem:[%s5] sm:$0x1]
        %v1405 = vlaneseq
        %v1406 = vshrl.u32 %v1405, 7
        %v1407 = vsub.s32 0, %v1406
        %v1408 = vrot.slane %v1403, %v1407
        %v1410 = vadd.f32 %v1382, %v1408
        %v1411 = vadd.f32 %v1410, %v551
        %v1412 = vld [vmem:[%s10] sm:$0x1]
        %v1413 = vld [vmem:[%s11] sm:$0x1]
        %v1414 = vsel %vm610, %v1411, 0.0
        %1415 = vadd.xlane.f32.xlu0 %v1414
        %v1416 = vpop.xlane.xlu0 %1415
        %v1417 = vrcp.pop 32.0
        %v1418 = vmul.f32 %v1416, %v1417
        %v1419 = vsub.f32 %v1411, %v1418
        %v1420 = vmul.f32 %v1419, %v1419
        %v1421 = vsel %vm610, %v1420, 0.0
        %1422 = vadd.xlane.f32.xlu0 %v1421
        %v1423 = vpop.xlane.xlu0 %1422
        %v1424 = vmul.f32 %v1423, %v1417
        %v1425 = vadd.f32 %v1424, 1e-09
        %v1426 = vrsqrt.pop %v1425
        %v1427 = vmul.f32 %v1419, %v1426
        %v1429 = vlaneseq
        %v1430 = vshrl.u32 %v1429, 7
        %v1431 = vsub.s32 0, %v1430
        %v1432 = vrot.slane %v1412, %v1431
        %v1434 = vmul.f32 %v1427, %v1432
        %v1436 = vlaneseq
        %v1437 = vshrl.u32 %v1436, 7
        %v1438 = vsub.s32 0, %v1437
        %v1439 = vrot.slane %v1413, %v1438
        %v1441 = vadd.f32 %v1434, %v1439
        %v1442 = vpack.c.bf16 %v1441, %v1441
        %v1443 = vld [vmem:[#allocation7] sm:$0xf]
        %v1444 = vld [vmem:[#allocation7 + $0x4] sm:$0xf]
        %v1445 = vld [vmem:[#allocation7 + $0x8] sm:$0xf]
        %v1446 = vld [vmem:[#allocation7 + $0xc] sm:$0xf]
        %v1447 = vld [vmem:[%s7] sm:$0x1]
        %v1449 = vlaneseq
        %v1450 = vshrl.u32 %v1449, 7
        %v1451 = vsub.s32 0, %v1450
        %v1452 = vrot.slane %v1447, %v1451
        %v1458 = vunpack.c.l.b16 %v1443
        %v1459 = vunpack.c.l.b16 %v1444
        %v1460 = vunpack.c.l.b16 %v1445
        %v1461 = vunpack.c.l.b16 %v1446
        %v1462 = vpack.c.b16 %v1459, %v1458
        %v1463 = vpack.c.b16 %v1461, %v1460
        %v1467 = vsel %vm610, %v1442, 0
        %1469 = vmatprep.subr.bf16.mxu0 0
        %1470 = vmatpush1.bf16.msra.mxu0 %v1462
        %1471 = vmatprep.subr.bf16.mxu0 0
        %1472 = vmatpush1.bf16.msra.mxu0 %v1463
        %1473 = vmatprep.subr.bf16.mxu0 0
        %1474 = vmatpush1.bf16.msra.mxu0 0
        %1475 = vmatprep.subr.bf16.mxu0 0
        %1476 = vmatpush1.bf16.msra.mxu0 0
        %1477 = vmatprep.subr.bf16.mxu0 0
        %1478 = vmatpush1.bf16.msra.mxu0 0
        %1479 = vmatprep.subr.bf16.mxu0 0
        %1480 = vmatpush1.bf16.msra.mxu0 0
        %1481 = vmatprep.subr.bf16.mxu0 0
        %1482 = vmatpush1.bf16.msra.mxu0 0
        %1483 = vmatprep.subr.bf16.mxu0 0
        %1484 = vmatpush1.bf16.msra.mxu0 0
        %1485 = vmatprep.subr.bf16.mxu0 0
        %1486 = vmatpush1.bf16.msra.mxu0 0
        %1487 = vmatprep.subr.bf16.mxu0 0
        %1488 = vmatpush1.bf16.msra.mxu0 0
        %1489 = vmatprep.subr.bf16.mxu0 0
        %1490 = vmatpush1.bf16.msra.mxu0 0
        %1491 = vmatprep.subr.bf16.mxu0 0
        %1492 = vmatpush1.bf16.msra.mxu0 0
        %1493 = vmatprep.subr.bf16.mxu0 0
        %1494 = vmatpush1.bf16.msra.mxu0 0
        %1495 = vmatprep.subr.bf16.mxu0 0
        %1496 = vmatpush1.bf16.msra.mxu0 0
        %1497 = vmatprep.subr.bf16.mxu0 0
        %1498 = vmatpush1.bf16.msra.mxu0 0
        %1499 = vmatprep.subr.bf16.mxu0 0
        %1500 = vmatpush1.bf16.msra.mxu0 0
        %1501 = vmatprep.mubr.bf16.mxu0 0
        %1502 = vmatmul.mubr.bf16.gmra.mrb[0].mxu0 %v1467
        %v1503 = vpop.f32.mrb[0].mxu0
        %v1504 = vadd.f32 %v1452, %v1503
        %v1505 = vpop.f32.mrb[0].mxu0
        %v1506 = vpop.f32.mrb[0].mxu0
        %v1507 = vpop.f32.mrb[0].mxu0
        %1508 = vdwg.mxu0
        %v1509 = vmax.f32 %v1504, 0.0
        %v1510 = vpack.c.bf16 %v1509, %v1509
        %v1511 = vld [vmem:[%s8] sm:$0xf]
        %v1512 = vld [vmem:[%s8 + $0x4] sm:$0xf]
        %v1513 = vld [vmem:[%s8 + $0x8] sm:$0xf]
        %v1514 = vld [vmem:[%s8 + $0xc] sm:$0xf]
        %v1515 = vld [vmem:[%s8 + $0x10] sm:$0xf]
        %v1516 = vld [vmem:[%s8 + $0x14] sm:$0xf]
        %v1517 = vld [vmem:[%s8 + $0x18] sm:$0xf]
        %v1518 = vld [vmem:[%s8 + $0x1c] sm:$0xf]
        %v1519 = vld [vmem:[%s9] sm:$0x1]
        %v1521 = vlaneseq
        %v1522 = vshrl.u32 %v1521, 7
        %v1523 = vsub.s32 0, %v1522
        %v1524 = vrot.slane %v1519, %v1523
        %v1534 = vunpack.c.l.b16 %v1511
        %v1535 = vunpack.c.l.b16 %v1512
        %v1536 = vunpack.c.l.b16 %v1513
        %v1537 = vunpack.c.l.b16 %v1514
        %v1538 = vunpack.c.l.b16 %v1515
        %v1539 = vunpack.c.l.b16 %v1516
        %v1540 = vunpack.c.l.b16 %v1517
        %v1541 = vunpack.c.l.b16 %v1518
        %v1542 = vpack.c.b16 %v1535, %v1534
        %v1543 = vpack.c.b16 %v1537, %v1536
        %v1544 = vpack.c.b16 %v1539, %v1538
        %v1545 = vpack.c.b16 %v1541, %v1540
        %vm1550 = vcmask 523264
        %v1552 = vsel %vm1550, %v1510, 0
        %1554 = vmatprep.subr.bf16.mxu0 0
        %1555 = vmatpush1.bf16.msra.mxu0 %v1542
        %1556 = vmatprep.subr.bf16.mxu0 0
        %1557 = vmatpush1.bf16.msra.mxu0 %v1543
        %1558 = vmatprep.subr.bf16.mxu0 0
        %1559 = vmatpush1.bf16.msra.mxu0 %v1544
        %1560 = vmatprep.subr.bf16.mxu0 0
        %1561 = vmatpush1.bf16.msra.mxu0 %v1545
        %1562 = vmatprep.subr.bf16.mxu0 0
        %1563 = vmatpush1.bf16.msra.mxu0 0
        %1564 = vmatprep.subr.bf16.mxu0 0
        %1565 = vmatpush1.bf16.msra.mxu0 0
        %1566 = vmatprep.subr.bf16.mxu0 0
        %1567 = vmatpush1.bf16.msra.mxu0 0
        %1568 = vmatprep.subr.bf16.mxu0 0
        %1569 = vmatpush1.bf16.msra.mxu0 0
        %1570 = vmatprep.subr.bf16.mxu0 0
        %1571 = vmatpush1.bf16.msra.mxu0 0
        %1572 = vmatprep.subr.bf16.mxu0 0
        %1573 = vmatpush1.bf16.msra.mxu0 0
        %1574 = vmatprep.subr.bf16.mxu0 0
        %1575 = vmatpush1.bf16.msra.mxu0 0
        %1576 = vmatprep.subr.bf16.mxu0 0
        %1577 = vmatpush1.bf16.msra.mxu0 0
        %1578 = vmatprep.subr.bf16.mxu0 0
        %1579 = vmatpush1.bf16.msra.mxu0 0
        %1580 = vmatprep.subr.bf16.mxu0 0
        %1581 = vmatpush1.bf16.msra.mxu0 0
        %1582 = vmatprep.subr.bf16.mxu0 0
        %1583 = vmatpush1.bf16.msra.mxu0 0
        %1584 = vmatprep.subr.bf16.mxu0 0
        %1585 = vmatpush1.bf16.msra.mxu0 0
        %1586 = vmatprep.mubr.bf16.mxu0 0
        %1587 = vmatmul.mubr.bf16.gmra.mrb[0].mxu0 %v1552
        %v1588 = vpop.f32.mrb[0].mxu0
        %v1589 = vadd.f32 %v1524, %v1588
        %v1590 = vpop.f32.mrb[0].mxu0
        %v1591 = vpop.f32.mrb[0].mxu0
        %v1592 = vpop.f32.mrb[0].mxu0
        %1593 = vdwg.mxu0
        %v1594 = vadd.f32 %v1589, %v1441
        %v1595 = vld [vmem:[%s12] sm:$0x1]
        %v1596 = vld [vmem:[%s13] sm:$0x1]
        %v1597 = vsel %vm610, %v1594, 0.0
        %1598 = vadd.xlane.f32.xlu0 %v1597
        %v1599 = vpop.xlane.xlu0 %1598
        %v1600 = vmul.f32 %v1599, %v1417
        %v1601 = vsub.f32 %v1594, %v1600
        %v1602 = vmul.f32 %v1601, %v1601
        %v1603 = vsel %vm610, %v1602, 0.0
        %1604 = vadd.xlane.f32.xlu0 %v1603
        %v1605 = vpop.xlane.xlu0 %1604
        %v1606 = vmul.f32 %v1605, %v1417
        %v1607 = vadd.f32 %v1606, 1e-09
        %v1608 = vrsqrt.pop %v1607
        %v1609 = vmul.f32 %v1601, %v1608
        %v1611 = vlaneseq
        %v1612 = vshrl.u32 %v1611, 7
        %v1613 = vsub.s32 0, %v1612
        %v1614 = vrot.slane %v1595, %v1613
        %v1616 = vmul.f32 %v1609, %v1614
        %v1618 = vlaneseq
        %v1619 = vshrl.u32 %v1618, 7
        %v1620 = vsub.s32 0, %v1619
        %v1621 = vrot.slane %v1596, %v1620
        %v1623 = vadd.f32 %v1616, %v1621
        %1624 = vst.msk [vmem:[%s542] sm:$0xff] %vm610, %v1623
        %s1625 = sand.u32 %s344, 1
        %s1626 = scalar_lea.sflag [#allocation4], %s1625
        %s1627 = sand.u32 %s344, 1
        %s1628 = smul.addr %s1627, 8
        %s1629 = scalar_lea.vmem [#allocation8], %s1628
        %s1630 = sand.u32 %s370, 1
        %s1631 = scalar_lea.sflag [#allocation10], %s1630
        %s1632 = sand.u32 %s370, 1
        %s1633 = smul.addr %s1632, 4
        %s1634 = scalar_lea.vmem [#allocation9], %s1633
        // Predicated region
        $region89: #{tpu_custom_call.1} parent=75 // pred_check
          %p1635 = pneg %p354
        $region90: #{tpu_custom_call.1} parent=75 // pred_check_branch
          %1637 = sbr.rel (%p1635) target = $region92
        $region91: #{tpu_custom_call.1} parent=75 // pred_region
          %s1639 = ssub.s32 128, 128
          %1640 = vsyncadd %s1626, %s1639
          %s1641 = smul.addr %s37, 128
          %s1642 = scalar_lea.hbm %s14, %s1641
          %s1644 = sshll.u32 %s1629, 4
          %s1645 = int_to_ptr.vmem [resolvable:$true] %s1644
          %1647 = dma.vmem_to_hbm [thread:$0]  %s1645, 128, %s1642, %s1626
        $region92: #{tpu_custom_call.1} parent=75 // pred_fallthru
          _
        // Predicated region
        $region93: #{tpu_custom_call.1} parent=75 // pred_check
          %p1648 = pneg %p380
        $region94: #{tpu_custom_call.1} parent=75 // pred_check_branch
          %1650 = sbr.rel (%p1648) target = $region96
        $region95: #{tpu_custom_call.1} parent=75 // pred_region
          %s1652 = ssub.s32 64, 64
          %1653 = vsyncadd %s1631, %s1652
          %s1654 = smul.addr %s37, 64
          %s1655 = scalar_lea.hbm %s15, %s1654
          %s1657 = sshll.u32 %s1634, 4
          %s1658 = int_to_ptr.vmem [resolvable:$true] %s1657
          %1660 = dma.vmem_to_hbm [thread:$0]  %s1658, 64, %s1655, %s1631
        $region96: #{tpu_custom_call.1} parent=75 // pred_fallthru
          _
      $region76: #{tpu_custom_call.1} parent=5 // pred_fallthru
        _
      %p1661 = scmp.le.s32.totalorder 2, %s32
      // Predicated region
      $region97: #{tpu_custom_call.1} parent=5 // pred_check
        %p1662 = pneg %p1661
      $region98: #{tpu_custom_call.1} parent=5 // pred_check_branch
        %1664 = sbr.rel (%p1662) target = $region100
      $region99: #{tpu_custom_call.1} parent=5 // pred_region
        %s1665 = ssub.s32 %s32, 2
        // Predicated region
        $region101: #{tpu_custom_call.1} parent=99 // pred_check
          %p1666 = pneg %p360
        $region102: #{tpu_custom_call.1} parent=99 // pred_check_branch
          %1668 = sbr.rel (%p1666) target = $region104
        $region103: #{tpu_custom_call.1} parent=99 // pred_region
          %s1669 = sand.u32 %s345, 1
          %s1670 = scalar_lea.sflag [#allocation4], %s1669
          %s1671 = sand.u32 %s345, 1
          %s1672 = smul.addr %s1671, 8
          %s1673 = scalar_lea.vmem [#allocation8], %s1672
          %1674 = dma.done %s1670, 128
        $region104: #{tpu_custom_call.1} parent=99 // pred_fallthru
          _
        // Predicated region
        $region105: #{tpu_custom_call.1} parent=99 // pred_check
          %p1675 = pneg %p386
        $region106: #{tpu_custom_call.1} parent=99 // pred_check_branch
          %1677 = sbr.rel (%p1675) target = $region108
        $region107: #{tpu_custom_call.1} parent=99 // pred_region
          %s1678 = sand.u32 %s371, 1
          %s1679 = scalar_lea.sflag [#allocation10], %s1678
          %s1680 = sand.u32 %s371, 1
          %s1681 = smul.addr %s1680, 4
          %s1682 = scalar_lea.vmem [#allocation9], %s1681
          %1683 = dma.done %s1679, 64
        $region108: #{tpu_custom_call.1} parent=99 // pred_fallthru
          _
      $region100: #{tpu_custom_call.1} parent=5 // pred_fallthru
        _
    $region6: #{tpu_custom_call.1} parent=1 // loop_footer
      %s36 = sadd.s32 1, %s32
    $region7: #{tpu_custom_call.1} parent=1 // loop_footer_branch
      %31 = sbr.rel target = $region3
    $region8: #{tpu_custom_call.1} parent=1 // loop_exit
      _
    %1684 = vsyncpa [#allocation3], 1
    %s1685 = scalar_lea.sflag [#allocation3], 1
    %1686 = vsyncpa %s1685, 1
    %1687 = vsyncpa [#allocation6], 1
    %1688 = vsyncpa [#allocation4], 1
    %s1689 = scalar_lea.sflag [#allocation4], 1
    %1690 = vsyncpa %s1689, 1
    %1691 = vsyncpa [#allocation10], 1
    %s1692 = scalar_lea.sflag [#allocation10], 1
    %1693 = vsyncpa %s1692, 1

</llo_original>
